<compile_context>
chip_gen: v6e
topology: v6e:2x2x1
jax: 0.10.0
libtpu: 0.0.40
codegen_flags: <defaults>
</compile_context>

<pallas_src>
import jax
import jax.numpy as jnp
from jax import lax
from jax.experimental import pallas as pl
from jax.experimental.pallas import tpu as pltpu

DIM = 32          # token width (`dim` argument of ImageTransform3D.forward)
K = 256           # codebook size of the synthetic VQ tokenizer
KC = 64           # codewords per chunk (keeps the distance chunk at 16 vregs)
NC = K // KC      # number of codebook chunks
SUB = 256         # token columns per inner-loop step (lane-aligned)
BIG_MAX = 16384   # max token columns per grid step (~4 MiB live VMEM, v7x-safe)


def _round_up(a, b):
    return ((a + b - 1) // b) * b


def _choose_big_tile(L):
    """Per-grid-step tile width: multiple of SUB, capped by BIG_MAX."""
    big = max(SUB, min(BIG_MAX, _round_up(L, SUB)))
    n = -(-L // big)
    if n > 1 and n % 2 == 1:
        # Prefer an even number of grid steps so dimension_semantics=("parallel",)
        # balances the two TensorCores on v7x.
        big_even = max(SUB, _round_up(-(-L // (n + 1)), SUB))
        if -(-L // big_even) % 2 == 0:
            big = big_even
    return big


def _encode_subtile(xs, cb_ref, cbn_ref):
    """xs: (DIM, SUB) MXU-dtype token columns -> (1, SUB) int32 nearest-codeword ids.

    cb_ref holds the codebook pre-scaled by -2, pre-transposed and pre-chunked
    as (NC, DIM, KC); cbn_ref holds per-codeword ||c||^2 as (NC, KC, 1) f32.
    ||x||^2 is constant per column and omitted (cannot change the argmin).
    The full (K, SUB) distance tensor is never materialized: each (KC, SUB)
    chunk is folded into a running (1, SUB) min / argmin.
    """
    iota = lax.broadcasted_iota(jnp.int32, (KC, SUB), 0)
    best_d = jnp.full((1, SUB), jnp.inf, dtype=jnp.float32)
    best_i = jnp.zeros((1, SUB), dtype=jnp.int32)
    for c in range(NC):                                    # static, unrolled
        # MXU, lhs-transposed form: (-2c)^T . x, contracting DIM (dim 0 of both).
        xc = lax.dot_general(
            cb_ref[c], xs,
            dimension_numbers=(((0,), (0,)), ((), ())),
            preferred_element_type=jnp.float32,
        )                                                  # (KC, SUB) f32
        dist = xc + cbn_ref[c]                             # + ||c||^2 (lane broadcast)
        cmin = jnp.min(dist, axis=0, keepdims=True)        # (1, SUB)
        carg = jnp.min(jnp.where(dist == cmin, iota, KC),
                       axis=0, keepdims=True)              # first hit inside chunk
        take = cmin < best_d                               # strict: earlier chunk wins ties
        best_i = jnp.where(take, carg + c * KC, best_i)
        best_d = jnp.minimum(best_d, cmin)
    # TODO(synk): a packed value|index keyed min would collapse the cmp/select/min
    # passes into a single reduction, at the cost of exact tie-break semantics.
    return best_i


def _make_kernel(big, with_cond):
    n_sub = big // SUB

    def body(x_ref, cond_ref, cb_ref, cbn_ref, out_ref):
        @pl.loop(0, n_sub)
        def _(j):
            start = pl.multiple_of(j * SUB, SUB)
            xs = x_ref[:, pl.ds(start, SUB)]
            if with_cond:
                xs = xs - cond_ref[:, pl.ds(start, SUB)]
            xs = xs.astype(cb_ref.dtype)
            out_ref[:, pl.ds(start, SUB)] = _encode_subtile(xs, cb_ref, cbn_ref)

    if with_cond:
        def kernel(x_ref, cond_ref, cb_ref, cbn_ref, out_ref):
            body(x_ref, cond_ref, cb_ref, cbn_ref, out_ref)
    else:
        def kernel(x_ref, cb_ref, cbn_ref, out_ref):
            body(x_ref, None, cb_ref, cbn_ref, out_ref)
    return kernel


def vq_encode(x_cf, codebook, cond_cf=None, *,
              input_dtype=jnp.bfloat16, mxu_dtype=jnp.bfloat16):
    """x_cf: (DIM, L) channel-first token columns; codebook: (K, DIM);
    cond_cf: optional (DIM, L) condition.  Returns (L,) int32 token ids.

    input_dtype: HBM streaming dtype for x / cond (bf16 halves DMA bytes; the
    kernel is HBM-bandwidth-bound).  Use jnp.float32 if the x - cond subtract
    must happen at full precision.
    """
    d, L = x_cf.shape
    assert d == DIM and codebook.shape == (K, DIM)

    big = _choose_big_tile(L)
    n_tiles = -(-L // big)

    cb = codebook.astype(jnp.float32)
    cbn = jnp.sum(cb * cb, axis=-1).reshape(NC, KC, 1)            # ||c||^2, f32
    cb2t = (-2.0 * cb).T.astype(mxu_dtype)                        # (DIM, K), -2 folded in
    cb_chunks = cb2t.reshape(DIM, NC, KC).transpose(1, 0, 2)      # (NC, DIM, KC) lane-dense

    with_cond = cond_cf is not None
    kernel = _make_kernel(big, with_cond)

    in_specs = [pl.BlockSpec((DIM, big), lambda i: (0, i))]       # x (ragged tail padded)
    inputs = [x_cf.astype(input_dtype)]
    if with_cond:
        in_specs.append(pl.BlockSpec((DIM, big), lambda i: (0, i)))
        inputs.append(cond_cf.astype(input_dtype))
    in_specs += [
        pl.BlockSpec((NC, DIM, KC), lambda i: (0, 0, 0)),         # codebook chunks, resident
        pl.BlockSpec((NC, KC, 1), lambda i: (0, 0, 0)),           # per-codeword norms
    ]
    inputs += [cb_chunks, cbn]

    idx = pl.pallas_call(
        kernel,
        out_shape=jax.ShapeDtypeStruct((n_tiles, big), jnp.int32),
        grid_spec=pltpu.PrefetchScalarGridSpec(
            num_scalar_prefetch=0,
            grid=(n_tiles,),
            in_specs=in_specs,
            out_specs=pl.BlockSpec((1, big), lambda i: (i, 0)),   # lane-dense int32 row
        ),
        compiler_params=pltpu.CompilerParams(dimension_semantics=("parallel",)),
    )(*inputs)
    # Row-major (n_tiles, big) -> flat token stream; drop padded-tail tokens
    # (they were computed from unspecified block-padding values and are invalid).
    return idx.reshape(-1)[:L]


def image_transform_3d(state_dict, y, dim=DIM):
    """ImageTransform3D.forward: concat -> zero-pad to multiple of dim -> (1, dim, L)."""
    if "state_dict" in state_dict:
        state_dict = state_dict["state_dict"]
    cat = jnp.concatenate([jnp.ravel(v) for v in state_dict.values()])
    rem = cat.shape[0] % dim
    if rem != 0:
        cat = jnp.concatenate([cat, jnp.zeros((dim - rem,), cat.dtype)])
    return cat.reshape(1, dim, -1), y


def token_transform_3d_forward(state_dict, y, condition, codebook, *,
                               input_dtype=jnp.bfloat16):
    """TokenTransform3D.forward."""
    weights, y = image_transform_3d(state_dict, y)                # (1, DIM, L)
    x_cf = weights[0]                                             # (DIM, L) channel-first
    cond_cf = None
    if condition is not None:
        cond_cf = condition.reshape(weights.shape)[0]             # (DIM, L)
    tokens = vq_encode(x_cf, codebook, cond_cf, input_dtype=input_dtype)
    # TrainingTransform3D.forward
    return tokens[:-1], tokens[1:]


def _reference_tokens(x_cf, codebook, cond_cf, input_dtype=jnp.bfloat16,
                      mxu_dtype=jnp.bfloat16):
    """Pure-JAX reference applying the same roundings as the kernel."""
    xs = x_cf.astype(input_dtype)
    if cond_cf is not None:
        xs = xs - cond_cf.astype(input_dtype)
    cb = codebook.astype(jnp.float32)
    cbn = jnp.sum(cb * cb, axis=-1)[:, None]                      # (K, 1)
    xc = jnp.dot((-2.0 * cb).astype(mxu_dtype), xs.astype(mxu_dtype),
                 preferred_element_type=jnp.float32)              # (K, L)
    return jnp.argmin(cbn + xc, axis=0).astype(jnp.int32)


if __name__ == "__main__":
    key = jax.random.PRNGKey(0)
    k1, k2, k3, k4, k_cond, k_cb, k_y = jax.random.split(key, 7)

    # Synthetic model state_dict: 16576 params -> L = 518 token columns of width 32
    # (one grid step with three 256-lane sub-tiles; ragged tail is sliced off).
    state_dict = {
        "layer1.weight": jax.random.normal(k1, (128, 64), jnp.float32) * 0.1,
        "layer1.bias":   jax.random.normal(k2, (64,), jnp.float32) * 0.1,
        "layer2.weight": jax.random.normal(k3, (64, 128), jnp.float32) * 0.1,
        "layer2.bias":   jax.random.normal(k4, (128,), jnp.float32) * 0.1,
    }
    total = sum(int(v.size) for v in state_dict.values())
    L = -(-total // DIM)

    condition = jax.random.normal(k_cond, (1, DIM, L), jnp.float32) * 0.01
    codebook = jax.random.normal(k_cb, (K, DIM), jnp.float32) * 0.1
    y = jax.random.normal(k_y, (4,), jnp.float32)   # passed through untouched

    # conditioned path
    X, Y = token_transform_3d_forward(state_dict, y, condition, codebook)
    jax.block_until_ready((X, Y))
    assert X.shape == (L - 1,) and Y.shape == (L - 1,)
    assert X.dtype == jnp.int32 and Y.dtype == jnp.int32

    # condition-free path (kernel variant without the cond stream / subtract)
    X2, Y2 = token_transform_3d_forward(state_dict, y, None, codebook)
    jax.block_until_ready((X2, Y2))
    assert X2.shape == (L - 1,) and Y2.shape == (L - 1,)

    # correctness vs pure-JAX reference (same bf16 roundings; only MXU
    # accumulation-order differences -> exact ties are the only flip risk)
    weights, _ = image_transform_3d(state_dict, y)
    x_cf = weights[0]
    cond_cf = condition.reshape(weights.shape)[0]
    for cc in (cond_cf, None):
        tok = vq_encode(x_cf, codebook, cc)
        ref = _reference_tokens(x_cf, codebook, cc)
        match = float(jnp.mean((tok == ref).astype(jnp.float32)))
        assert match >= 0.98, f"token mismatch fraction {1.0 - match:.4f}"

    print("KERNEL_OK")
</pallas_src>

<mosaic_0001>
module attributes {stable_mosaic.version = 11 : i64} {
  func.func @kernel(%arg0: i32, %arg1: memref<32x768xbf16, #tpu.memory_space<vmem>>, %arg2: memref<32x768xbf16, #tpu.memory_space<vmem>>, %arg3: memref<4x32x64xbf16, #tpu.memory_space<vmem>>, %arg4: memref<4x64x1xf32, #tpu.memory_space<vmem>>, %arg5: memref<1x768xi32, #tpu.memory_space<vmem>>) attributes {dimension_semantics = [#tpu.dimension_semantics<parallel>], iteration_bounds = array<i64: 1>, scalar_prefetch = 0 : i64, scratch_operands = 0 : i64, tpu.core_type = #tpu.core_type<tc>, window_params = [{transform_indices = @transform_0, window_bounds = array<i64: 32, 768>}, {transform_indices = @transform_1, window_bounds = array<i64: 32, 768>}, {pipeline_mode = #tpu.pipeline_mode<synchronous>, transform_indices = @transform_2, window_bounds = array<i64: 4, 32, 64>}, {pipeline_mode = #tpu.pipeline_mode<synchronous>, transform_indices = @transform_3, window_bounds = array<i64: 4, 64, 1>}, {transform_indices = @transform_4, window_bounds = array<i64: 1, 768>}]} {
    %c0_i32 = arith.constant 0 : i32
    %c3_i32 = arith.constant 3 : i32
    %0 = arith.addi %c0_i32, %c3_i32 : i32
    %c1_i32 = arith.constant 1 : i32
    scf.for %arg6 = %c0_i32 to %0 step %c1_i32  : i32 {
      %c1_i32_1 = arith.constant 1 : i32
      %1 = arith.muli %arg6, %c1_i32_1 : i32
      %c0_i32_2 = arith.constant 0 : i32
      %2 = arith.addi %c0_i32_2, %1 : i32
      %c256_i32 = arith.constant 256 : i32
      %3 = arith.muli %2, %c256_i32 : i32
      %4 = tpu.assume_multiple %3, 256 : i32
      %c0 = arith.constant 0 : index
      %5 = arith.index_cast %4 : i32 to index
      %6 = vector.load %arg1[%c0, %5] : memref<32x768xbf16, #tpu.memory_space<vmem>>, vector<32x256xbf16>
      %c0_3 = arith.constant 0 : index
      %7 = arith.index_cast %4 : i32 to index
      %8 = vector.load %arg2[%c0_3, %7] : memref<32x768xbf16, #tpu.memory_space<vmem>>, vector<32x256xbf16>
      %9 = arith.subf %6, %8 : vector<32x256xbf16>
      %10 = tpu.iota {dimensions = array<i32: 0>} : vector<64x256xi32>
      %cst = arith.constant 0x7F800000 : f32
      %11 = vector.broadcast %cst : f32 to vector<1x256xf32>
      %c0_i32_4 = arith.constant 0 : i32
      %12 = vector.broadcast %c0_i32_4 : i32 to vector<1x256xi32>
      %c0_5 = arith.constant 0 : index
      %c0_6 = arith.constant 0 : index
      %c0_7 = arith.constant 0 : index
      %13 = vector.load %arg3[%c0_5, %c0_6, %c0_7] : memref<4x32x64xbf16, #tpu.memory_space<vmem>>, vector<1x32x64xbf16>
      %14 = vector.shape_cast %13 : vector<1x32x64xbf16> to vector<32x64xbf16>
      %cst_8 = arith.constant dense<0.000000e+00> : vector<64x256xf32>
      %15 = tpu.matmul %14, %9, %cst_8 {dimension_numbers = #tpu.dot_dimension_numbers<[0], [0], [1], [1], [0, 1, 1, 1], [], []>} : vector<32x64xbf16>, vector<32x256xbf16>, vector<64x256xf32> -> vector<64x256xf32>
      %c0_9 = arith.constant 0 : index
      %c0_10 = arith.constant 0 : index
      %c0_11 = arith.constant 0 : index
      %16 = vector.load %arg4[%c0_9, %c0_10, %c0_11] : memref<4x64x1xf32, #tpu.memory_space<vmem>>, vector<1x64x1xf32>
      %17 = vector.shape_cast %16 : vector<1x64x1xf32> to vector<64x1xf32>
      %18 = vector.broadcast %17 : vector<64x1xf32> to vector<64x256xf32>
      %19 = arith.addf %15, %18 : vector<64x256xf32>
      %cst_12 = arith.constant dense<0x7F800000> : vector<256xf32>
      %20 = vector.multi_reduction <minimumf>, %19, %cst_12 [0] : vector<64x256xf32> to vector<256xf32>
      %21 = vector.shape_cast %20 : vector<256xf32> to vector<1x256xf32>
      %22 = vector.broadcast %21 : vector<1x256xf32> to vector<64x256xf32>
      %23 = arith.cmpf oeq, %19, %22 : vector<64x256xf32>
      %c64_i32 = arith.constant 64 : i32
      %24 = vector.broadcast %c64_i32 : i32 to vector<64x256xi32>
      %25 = arith.select %23, %10, %24 : vector<64x256xi1>, vector<64x256xi32>
      %cst_13 = arith.constant dense<2147483647> : vector<256xi32>
      %26 = vector.multi_reduction <minsi>, %25, %cst_13 [0] : vector<64x256xi32> to vector<256xi32>
      %27 = vector.shape_cast %26 : vector<256xi32> to vector<1x256xi32>
      %28 = arith.cmpf olt, %21, %11 : vector<1x256xf32>
      %c0_i32_14 = arith.constant 0 : i32
      %29 = vector.broadcast %c0_i32_14 : i32 to vector<1x256xi32>
      %30 = arith.addi %27, %29 : vector<1x256xi32>
      %31 = arith.select %28, %30, %12 : vector<1x256xi1>, vector<1x256xi32>
      %32 = arith.minimumf %11, %21 : vector<1x256xf32>
      %c1 = arith.constant 1 : index
      %c0_15 = arith.constant 0 : index
      %c0_16 = arith.constant 0 : index
      %33 = vector.load %arg3[%c1, %c0_15, %c0_16] : memref<4x32x64xbf16, #tpu.memory_space<vmem>>, vector<1x32x64xbf16>
      %34 = vector.shape_cast %33 : vector<1x32x64xbf16> to vector<32x64xbf16>
      %cst_17 = arith.constant dense<0.000000e+00> : vector<64x256xf32>
      %35 = tpu.matmul %34, %9, %cst_17 {dimension_numbers = #tpu.dot_dimension_numbers<[0], [0], [1], [1], [0, 1, 1, 1], [], []>} : vector<32x64xbf16>, vector<32x256xbf16>, vector<64x256xf32> -> vector<64x256xf32>
      %c1_18 = arith.constant 1 : index
      %c0_19 = arith.constant 0 : index
      %c0_20 = arith.constant 0 : index
      %36 = vector.load %arg4[%c1_18, %c0_19, %c0_20] : memref<4x64x1xf32, #tpu.memory_space<vmem>>, vector<1x64x1xf32>
      %37 = vector.shape_cast %36 : vector<1x64x1xf32> to vector<64x1xf32>
      %38 = vector.broadcast %37 : vector<64x1xf32> to vector<64x256xf32>
      %39 = arith.addf %35, %38 : vector<64x256xf32>
      %cst_21 = arith.constant dense<0x7F800000> : vector<256xf32>
      %40 = vector.multi_reduction <minimumf>, %39, %cst_21 [0] : vector<64x256xf32> to vector<256xf32>
      %41 = vector.shape_cast %40 : vector<256xf32> to vector<1x256xf32>
      %42 = vector.broadcast %41 : vector<1x256xf32> to vector<64x256xf32>
      %43 = arith.cmpf oeq, %39, %42 : vector<64x256xf32>
      %c64_i32_22 = arith.constant 64 : i32
      %44 = vector.broadcast %c64_i32_22 : i32 to vector<64x256xi32>
      %45 = arith.select %43, %10, %44 : vector<64x256xi1>, vector<64x256xi32>
      %cst_23 = arith.constant dense<2147483647> : vector<256xi32>
      %46 = vector.multi_reduction <minsi>, %45, %cst_23 [0] : vector<64x256xi32> to vector<256xi32>
      %47 = vector.shape_cast %46 : vector<256xi32> to vector<1x256xi32>
      %48 = arith.cmpf olt, %41, %32 : vector<1x256xf32>
      %c64_i32_24 = arith.constant 64 : i32
      %49 = vector.broadcast %c64_i32_24 : i32 to vector<1x256xi32>
      %50 = arith.addi %47, %49 : vector<1x256xi32>
      %51 = arith.select %48, %50, %31 : vector<1x256xi1>, vector<1x256xi32>
      %52 = arith.minimumf %32, %41 : vector<1x256xf32>
      %c2 = arith.constant 2 : index
      %c0_25 = arith.constant 0 : index
      %c0_26 = arith.constant 0 : index
      %53 = vector.load %arg3[%c2, %c0_25, %c0_26] : memref<4x32x64xbf16, #tpu.memory_space<vmem>>, vector<1x32x64xbf16>
      %54 = vector.shape_cast %53 : vector<1x32x64xbf16> to vector<32x64xbf16>
      %cst_27 = arith.constant dense<0.000000e+00> : vector<64x256xf32>
      %55 = tpu.matmul %54, %9, %cst_27 {dimension_numbers = #tpu.dot_dimension_numbers<[0], [0], [1], [1], [0, 1, 1, 1], [], []>} : vector<32x64xbf16>, vector<32x256xbf16>, vector<64x256xf32> -> vector<64x256xf32>
      %c2_28 = arith.constant 2 : index
      %c0_29 = arith.constant 0 : index
      %c0_30 = arith.constant 0 : index
      %56 = vector.load %arg4[%c2_28, %c0_29, %c0_30] : memref<4x64x1xf32, #tpu.memory_space<vmem>>, vector<1x64x1xf32>
      %57 = vector.shape_cast %56 : vector<1x64x1xf32> to vector<64x1xf32>
      %58 = vector.broadcast %57 : vector<64x1xf32> to vector<64x256xf32>
      %59 = arith.addf %55, %58 : vector<64x256xf32>
      %cst_31 = arith.constant dense<0x7F800000> : vector<256xf32>
      %60 = vector.multi_reduction <minimumf>, %59, %cst_31 [0] : vector<64x256xf32> to vector<256xf32>
      %61 = vector.shape_cast %60 : vector<256xf32> to vector<1x256xf32>
      %62 = vector.broadcast %61 : vector<1x256xf32> to vector<64x256xf32>
      %63 = arith.cmpf oeq, %59, %62 : vector<64x256xf32>
      %c64_i32_32 = arith.constant 64 : i32
      %64 = vector.broadcast %c64_i32_32 : i32 to vector<64x256xi32>
      %65 = arith.select %63, %10, %64 : vector<64x256xi1>, vector<64x256xi32>
      %cst_33 = arith.constant dense<2147483647> : vector<256xi32>
      %66 = vector.multi_reduction <minsi>, %65, %cst_33 [0] : vector<64x256xi32> to vector<256xi32>
      %67 = vector.shape_cast %66 : vector<256xi32> to vector<1x256xi32>
      %68 = arith.cmpf olt, %61, %52 : vector<1x256xf32>
      %c128_i32 = arith.constant 128 : i32
      %69 = vector.broadcast %c128_i32 : i32 to vector<1x256xi32>
      %70 = arith.addi %67, %69 : vector<1x256xi32>
      %71 = arith.select %68, %70, %51 : vector<1x256xi1>, vector<1x256xi32>
      %72 = arith.minimumf %52, %61 : vector<1x256xf32>
      %c3 = arith.constant 3 : index
      %c0_34 = arith.constant 0 : index
      %c0_35 = arith.constant 0 : index
      %73 = vector.load %arg3[%c3, %c0_34, %c0_35] : memref<4x32x64xbf16, #tpu.memory_space<vmem>>, vector<1x32x64xbf16>
      %74 = vector.shape_cast %73 : vector<1x32x64xbf16> to vector<32x64xbf16>
      %cst_36 = arith.constant dense<0.000000e+00> : vector<64x256xf32>
      %75 = tpu.matmul %74, %9, %cst_36 {dimension_numbers = #tpu.dot_dimension_numbers<[0], [0], [1], [1], [0, 1, 1, 1], [], []>} : vector<32x64xbf16>, vector<32x256xbf16>, vector<64x256xf32> -> vector<64x256xf32>
      %c3_37 = arith.constant 3 : index
      %c0_38 = arith.constant 0 : index
      %c0_39 = arith.constant 0 : index
      %76 = vector.load %arg4[%c3_37, %c0_38, %c0_39] : memref<4x64x1xf32, #tpu.memory_space<vmem>>, vector<1x64x1xf32>
      %77 = vector.shape_cast %76 : vector<1x64x1xf32> to vector<64x1xf32>
      %78 = vector.broadcast %77 : vector<64x1xf32> to vector<64x256xf32>
      %79 = arith.addf %75, %78 : vector<64x256xf32>
      %cst_40 = arith.constant dense<0x7F800000> : vector<256xf32>
      %80 = vector.multi_reduction <minimumf>, %79, %cst_40 [0] : vector<64x256xf32> to vector<256xf32>
      %81 = vector.shape_cast %80 : vector<256xf32> to vector<1x256xf32>
      %82 = vector.broadcast %81 : vector<1x256xf32> to vector<64x256xf32>
      %83 = arith.cmpf oeq, %79, %82 : vector<64x256xf32>
      %c64_i32_41 = arith.constant 64 : i32
      %84 = vector.broadcast %c64_i32_41 : i32 to vector<64x256xi32>
      %85 = arith.select %83, %10, %84 : vector<64x256xi1>, vector<64x256xi32>
      %cst_42 = arith.constant dense<2147483647> : vector<256xi32>
      %86 = vector.multi_reduction <minsi>, %85, %cst_42 [0] : vector<64x256xi32> to vector<256xi32>
      %87 = vector.shape_cast %86 : vector<256xi32> to vector<1x256xi32>
      %88 = arith.cmpf olt, %81, %72 : vector<1x256xf32>
      %c192_i32 = arith.constant 192 : i32
      %89 = vector.broadcast %c192_i32 : i32 to vector<1x256xi32>
      %90 = arith.addi %87, %89 : vector<1x256xi32>
      %91 = arith.select %88, %90, %71 : vector<1x256xi1>, vector<1x256xi32>
      %c0_43 = arith.constant 0 : index
      %92 = arith.index_cast %4 : i32 to index
      %93 = vector.load %arg5[%c0_43, %92] : memref<1x768xi32, #tpu.memory_space<vmem>>, vector<1x256xi32>
      tpu.vector_store %arg5[%c0_43, %92], %91 {strides = array<i32>} : memref<1x768xi32, #tpu.memory_space<vmem>>, vector<1x256xi32>,
    }
    %c3_i32_0 = arith.constant 3 : i32
    return
  }
  func.func @transform_0(%arg0: i32) -> (i32, i32) {
    %c0_i32 = arith.constant 0 : i32
    %c0_i32_0 = arith.constant 0 : i32
    return %c0_i32, %arg0 : i32, i32
  }
  func.func @transform_1(%arg0: i32) -> (i32, i32) {
    %c0_i32 = arith.constant 0 : i32
    %c0_i32_0 = arith.constant 0 : i32
    return %c0_i32, %arg0 : i32, i32
  }
  func.func @transform_2(%arg0: i32) -> (i32, i32, i32) {
    %c0_i32 = arith.constant 0 : i32
    %c0_i32_0 = arith.constant 0 : i32
    %c0_i32_1 = arith.constant 0 : i32
    %c0_i32_2 = arith.constant 0 : i32
    return %c0_i32, %c0_i32_0, %c0_i32_1 : i32, i32, i32
  }
  func.func @transform_3(%arg0: i32) -> (i32, i32, i32) {
    %c0_i32 = arith.constant 0 : i32
    %c0_i32_0 = arith.constant 0 : i32
    %c0_i32_1 = arith.constant 0 : i32
    %c0_i32_2 = arith.constant 0 : i32
    return %c0_i32, %c0_i32_0, %c0_i32_1 : i32, i32, i32
  }
  func.func @transform_4(%arg0: i32) -> (i32, i32) {
    %c0_i32 = arith.constant 0 : i32
    %c0_i32_0 = arith.constant 0 : i32
    return %arg0, %c0_i32 : i32, i32
  }
}

</mosaic_0001>

<llo_original>
// kernel: tpu_custom_call.1
$region0: #{tpu_custom_call.1}
  #allocation0 [shape = 'u32[]', space=smem, size = 0x4, offset = 0x4, fixed_abs, tag = 'smem constant byte address 0x4 - core index']
  #allocation1 [shape = 'u32[144,128]{1,0:T(1,128)}', space=vmem, size = 0x12000, scoped, tag = 'internal scratch']
  %s0 = inlined_call_operand.vmem [shape: bf16[32,518], index: 0, kind: input, shape index: {}]
  %s1 = inlined_call_operand.vmem [shape: bf16[32,518], index: 1, kind: input, shape index: {}]
  %s2 = inlined_call_operand.vmem [shape: bf16[4,32,64], index: 2, kind: input, shape index: {}]
  %s3 = inlined_call_operand.vmem [shape: f32[4,64,1], index: 3, kind: input, shape index: {}]
  %s4 = inlined_call_operand.hbm [shape: s32[1,768], index: 4, kind: output, shape index: {}]
  %s5 = sld [smem:[#allocation0]]
  $region85: #{tpu_custom_call.1} parent=0
    _
  %s7 = ssub.s32 1, %s5
  %s8 = scalar_select 0, %s7, %s5
  $region1: #{tpu_custom_call.1} parent=0
    #allocation2 [shape = 'u8[49152]{0}', space=vmem, size = 0xc000, scoped, tag = 'input window, operand 0, single buffered']
    #allocation3 [shape = 'u8[49152]{0}', space=vmem, size = 0xc000, scoped, tag = 'input window, operand 1, single buffered']
    #allocation4 [shape = 'u8[3072]{0}', space=vmem, size = 0xc00, scoped, tag = 'output window, operand 0, single buffered']
    #allocation5 [shape = 's32[1]{0}', space=sflag, size = 0x4, scoped, tag = 'scoped memory for tpu_custom_call.1']
    %9 = vsyncpa [#allocation5], 0
    // Predicated region
    $region2: #{tpu_custom_call.1} parent=1 // pred_check
      _
    $region3: #{tpu_custom_call.1} parent=1 // pred_check_branch
      %11 = sbr.rel (0) target = $region5
    $region4: #{tpu_custom_call.1} parent=1 // pred_region
      // Predicated region
      $region6: #{tpu_custom_call.1} parent=4 // pred_check
        _
      $region7: #{tpu_custom_call.1} parent=4 // pred_check_branch
        %13 = sbr.rel (0) target = $region9
      $region8: #{tpu_custom_call.1} parent=4 // pred_region
        // Predicated region
        $region10: #{tpu_custom_call.1} parent=8 // pred_check
          _
        $region11: #{tpu_custom_call.1} parent=8 // pred_check_branch
          %15 = sbr.rel (0) target = $region13
        $region12: #{tpu_custom_call.1} parent=8 // pred_region
          %s16 = scalar_lea.vmem %s0, 16
          %s17 = scalar_lea.vmem [#allocation2], 16
          loop: start=0, step=1, limit=1
          $region14: #{tpu_custom_call.1} parent=12 // loop_pre_header
            _
          $region15: #{tpu_custom_call.1} parent=12 // loop_header
            %s19 = sphi 0, %s23
            %p20 = scmp.ge.s32.totalorder %s19, 1
            %s24 = sphi %s0, %s0
            %s25 = sphi [#allocation2], [#allocation2]
          $region16: #{tpu_custom_call.1} parent=12 // loop_header_branch
            %22 = sbr.rel (%p20) target = $region20
          $region17: #{tpu_custom_call.1} parent=12 // loop_body
            %v26 = vld [vmem:[%s24] sm:$0xff]
            %27 = vst [vmem:[%s25] sm:$0xff] %v26
            %v28 = vld [vmem:[%s24 + $0x8] sm:$0xff]
            %29 = vst [vmem:[%s25 + $0x8] sm:$0xff] %v28
            %v30 = vld [vmem:[%s24 + $0x14] sm:$0xff]
            %31 = vst [vmem:[%s25 + $0x18] sm:$0xff] %v30
            %v32 = vld [vmem:[%s24 + $0x1c] sm:$0xff]
            %33 = vst [vmem:[%s25 + $0x20] sm:$0xff] %v32
            %v34 = vld [vmem:[%s24 + $0x28] sm:$0xff]
            %35 = vst [vmem:[%s25 + $0x30] sm:$0xff] %v34
            %v36 = vld [vmem:[%s24 + $0x30] sm:$0xff]
            %37 = vst [vmem:[%s25 + $0x38] sm:$0xff] %v36
            %v38 = vld [vmem:[%s24 + $0x3c] sm:$0xff]
            %39 = vst [vmem:[%s25 + $0x48] sm:$0xff] %v38
            %v40 = vld [vmem:[%s24 + $0x44] sm:$0xff]
            %41 = vst [vmem:[%s25 + $0x50] sm:$0xff] %v40
          $region18: #{tpu_custom_call.1} parent=12 // loop_footer
            %s23 = sadd.s32 1, %s19
          $region19: #{tpu_custom_call.1} parent=12 // loop_footer_branch
            %18 = sbr.rel target = $region15
          $region20: #{tpu_custom_call.1} parent=12 // loop_exit
            _
          %s43 = ssub.s32 16, 1
          loop: start=0, step=1, limit=1
          $region21: #{tpu_custom_call.1} parent=12 // loop_pre_header
            _
          $region22: #{tpu_custom_call.1} parent=12 // loop_header
            %s45 = sphi 0, %s49
            %p46 = scmp.ge.s32.totalorder %s45, 1
            %s50 = sphi %s16, %s16
            %s51 = sphi %s17, %s17
          $region23: #{tpu_custom_call.1} parent=12 // loop_header_branch
            %48 = sbr.rel (%p46) target = $region27
          $region24: #{tpu_custom_call.1} parent=12 // loop_body
            %v52 = vld [vmem:[%s50] sm:%s43]
            %53 = vst [vmem:[%s51] sm:%s43] %v52
            %v54 = vld [vmem:[%s50 + $0x14] sm:%s43]
            %55 = vst [vmem:[%s51 + $0x18] sm:%s43] %v54
            %v56 = vld [vmem:[%s50 + $0x28] sm:%s43]
            %57 = vst [vmem:[%s51 + $0x30] sm:%s43] %v56
            %v58 = vld [vmem:[%s50 + $0x3c] sm:%s43]
            %59 = vst [vmem:[%s51 + $0x48] sm:%s43] %v58
          $region25: #{tpu_custom_call.1} parent=12 // loop_footer
            %s49 = sadd.s32 1, %s45
          $region26: #{tpu_custom_call.1} parent=12 // loop_footer_branch
            %44 = sbr.rel target = $region22
          $region27: #{tpu_custom_call.1} parent=12 // loop_exit
            _
        $region13: #{tpu_custom_call.1} parent=8 // pred_fallthru
          _
      $region9: #{tpu_custom_call.1} parent=4 // pred_fallthru
        _
      %60 = vnop
    $region5: #{tpu_custom_call.1} parent=1 // pred_fallthru
      _
    // Predicated region
    $region28: #{tpu_custom_call.1} parent=1 // pred_check
      _
    $region29: #{tpu_custom_call.1} parent=1 // pred_check_branch
      %62 = sbr.rel (0) target = $region31
    $region30: #{tpu_custom_call.1} parent=1 // pred_region
      // Predicated region
      $region32: #{tpu_custom_call.1} parent=30 // pred_check
        _
      $region33: #{tpu_custom_call.1} parent=30 // pred_check_branch
        %64 = sbr.rel (0) target = $region35
      $region34: #{tpu_custom_call.1} parent=30 // pred_region
        // Predicated region
        $region36: #{tpu_custom_call.1} parent=34 // pred_check
          _
        $region37: #{tpu_custom_call.1} parent=34 // pred_check_branch
          %66 = sbr.rel (0) target = $region39
        $region38: #{tpu_custom_call.1} parent=34 // pred_region
          %s67 = scalar_lea.vmem %s1, 16
          %s68 = scalar_lea.vmem [#allocation3], 16
          loop: start=0, step=1, limit=1
          $region40: #{tpu_custom_call.1} parent=38 // loop_pre_header
            _
          $region41: #{tpu_custom_call.1} parent=38 // loop_header
            %s70 = sphi 0, %s74
            %p71 = scmp.ge.s32.totalorder %s70, 1
            %s75 = sphi %s1, %s1
            %s76 = sphi [#allocation3], [#allocation3]
          $region42: #{tpu_custom_call.1} parent=38 // loop_header_branch
            %73 = sbr.rel (%p71) target = $region46
          $region43: #{tpu_custom_call.1} parent=38 // loop_body
            %v77 = vld [vmem:[%s75] sm:$0xff]
            %78 = vst [vmem:[%s76] sm:$0xff] %v77
            %v79 = vld [vmem:[%s75 + $0x8] sm:$0xff]
            %80 = vst [vmem:[%s76 + $0x8] sm:$0xff] %v79
            %v81 = vld [vmem:[%s75 + $0x14] sm:$0xff]
            %82 = vst [vmem:[%s76 + $0x18] sm:$0xff] %v81
            %v83 = vld [vmem:[%s75 + $0x1c] sm:$0xff]
            %84 = vst [vmem:[%s76 + $0x20] sm:$0xff] %v83
            %v85 = vld [vmem:[%s75 + $0x28] sm:$0xff]
            %86 = vst [vmem:[%s76 + $0x30] sm:$0xff] %v85
            %v87 = vld [vmem:[%s75 + $0x30] sm:$0xff]
            %88 = vst [vmem:[%s76 + $0x38] sm:$0xff] %v87
            %v89 = vld [vmem:[%s75 + $0x3c] sm:$0xff]
            %90 = vst [vmem:[%s76 + $0x48] sm:$0xff] %v89
            %v91 = vld [vmem:[%s75 + $0x44] sm:$0xff]
            %92 = vst [vmem:[%s76 + $0x50] sm:$0xff] %v91
          $region44: #{tpu_custom_call.1} parent=38 // loop_footer
            %s74 = sadd.s32 1, %s70
          $region45: #{tpu_custom_call.1} parent=38 // loop_footer_branch
            %69 = sbr.rel target = $region41
          $region46: #{tpu_custom_call.1} parent=38 // loop_exit
            _
          %s94 = ssub.s32 16, 1
          loop: start=0, step=1, limit=1
          $region47: #{tpu_custom_call.1} parent=38 // loop_pre_header
            _
          $region48: #{tpu_custom_call.1} parent=38 // loop_header
            %s96 = sphi 0, %s100
            %p97 = scmp.ge.s32.totalorder %s96, 1
            %s101 = sphi %s67, %s67
            %s102 = sphi %s68, %s68
          $region49: #{tpu_custom_call.1} parent=38 // loop_header_branch
            %99 = sbr.rel (%p97) target = $region53
          $region50: #{tpu_custom_call.1} parent=38 // loop_body
            %v103 = vld [vmem:[%s101] sm:%s94]
            %104 = vst [vmem:[%s102] sm:%s94] %v103
            %v105 = vld [vmem:[%s101 + $0x14] sm:%s94]
            %106 = vst [vmem:[%s102 + $0x18] sm:%s94] %v105
            %v107 = vld [vmem:[%s101 + $0x28] sm:%s94]
            %108 = vst [vmem:[%s102 + $0x30] sm:%s94] %v107
            %v109 = vld [vmem:[%s101 + $0x3c] sm:%s94]
            %110 = vst [vmem:[%s102 + $0x48] sm:%s94] %v109
          $region51: #{tpu_custom_call.1} parent=38 // loop_footer
            %s100 = sadd.s32 1, %s96
          $region52: #{tpu_custom_call.1} parent=38 // loop_footer_branch
            %95 = sbr.rel target = $region48
          $region53: #{tpu_custom_call.1} parent=38 // loop_exit
            _
        $region39: #{tpu_custom_call.1} parent=34 // pred_fallthru
          _
      $region35: #{tpu_custom_call.1} parent=30 // pred_fallthru
        _
      %111 = vnop
    $region31: #{tpu_custom_call.1} parent=1 // pred_fallthru
      _
    // Predicated region
    $region54: #{tpu_custom_call.1} parent=1 // pred_check
      _
    $region55: #{tpu_custom_call.1} parent=1 // pred_check_branch
      %113 = sbr.rel (0) target = $region57
    $region56: #{tpu_custom_call.1} parent=1 // pred_region
      _
    $region57: #{tpu_custom_call.1} parent=1 // pred_fallthru
      _
    // Predicated region
    $region58: #{tpu_custom_call.1} parent=1 // pred_check
      _
    $region59: #{tpu_custom_call.1} parent=1 // pred_check_branch
      %115 = sbr.rel (0) target = $region61
    $region60: #{tpu_custom_call.1} parent=1 // pred_region
      _
    $region61: #{tpu_custom_call.1} parent=1 // pred_fallthru
      _
    // Predicated region
    $region62: #{tpu_custom_call.1} parent=1 // pred_check
      _
    $region63: #{tpu_custom_call.1} parent=1 // pred_check_branch
      %117 = sbr.rel (0) target = $region65
    $region64: #{tpu_custom_call.1} parent=1 // pred_region
      _
    $region65: #{tpu_custom_call.1} parent=1 // pred_fallthru
      _
    // Predicated region
    $region66: #{tpu_custom_call.1} parent=1 // pred_check
      _
    $region67: #{tpu_custom_call.1} parent=1 // pred_check_branch
      %119 = sbr.rel (0) target = $region69
    $region68: #{tpu_custom_call.1} parent=1 // pred_region
      _
    $region69: #{tpu_custom_call.1} parent=1 // pred_fallthru
      _
    loop: start=0, step=1, limit=3
    $region70: #{tpu_custom_call.1} parent=1 // loop_pre_header
      _
    $region71: #{tpu_custom_call.1} parent=1 // loop_header
      %s122 = sphi 0, %s126
      %p123 = scmp.ge.s32.totalorder %s122, 3
    $region72: #{tpu_custom_call.1} parent=1 // loop_header_branch
      %125 = sbr.rel (%p123) target = $region76
    $region73: #{tpu_custom_call.1} parent=1 // loop_body
      %s127 = smul.u32 %s122, 256
      %s128 = sshra.s32 %s127, 7
      %s129 = sand.u32 %s127, 127
      %s130 = smul.addr %s128, 4
      %s131 = scalar_lea.vmem [#allocation2], %s130
      %v132 = vld [vmem:[%s131] sm:$0xff]
      %v133 = vld [vmem:[%s131 + $0x18] sm:$0xff]
      %v134 = vld [vmem:[%s131 + $0x30] sm:$0xff]
      %v135 = vld [vmem:[%s131 + $0x48] sm:$0xff]
      %s136 = smul.addr %s128, 4
      %s137 = scalar_lea.vmem [#allocation3], %s136
      %v138 = vld [vmem:[%s137] sm:$0xff]
      %v139 = vld [vmem:[%s137 + $0x18] sm:$0xff]
      %v140 = vld [vmem:[%s137 + $0x30] sm:$0xff]
      %v141 = vld [vmem:[%s137 + $0x48] sm:$0xff]
      %v142 = vsub.bf16 %v132, %v138
      %v143 = vsub.bf16 %v133, %v139
      %v144 = vsub.bf16 %v134, %v140
      %v145 = vsub.bf16 %v135, %v141
      %v146 = vlaneseq
      %v147 = vshrl.u32 %v146, 7
      %v148 = vadd.s32 %v147, 8
      %v149 = vadd.s32 %v147, 16
      %v150 = vadd.s32 %v147, 24
      %v151 = vadd.s32 %v147, 32
      %v152 = vadd.s32 %v147, 40
      %v153 = vadd.s32 %v147, 48
      %v154 = vadd.s32 %v147, 56
      %v155 = vld [vmem:[%s2] sm:$0xf]
      %v156 = vld [vmem:[%s2 + $0x4] sm:$0xf]
      %v157 = vld [vmem:[%s2 + $0x8] sm:$0xf]
      %v158 = vld [vmem:[%s2 + $0xc] sm:$0xf]
      %v159 = vld [vmem:[%s3] sm:$0xff]
      %v160 = vld [vmem:[%s3 + $0x8] sm:$0xff]
      %v161 = vld [vmem:[%s3 + $0x10] sm:$0xff]
      %v162 = vld [vmem:[%s3 + $0x18] sm:$0xff]
      %v163 = vld [vmem:[%s3 + $0x20] sm:$0xff]
      %v164 = vld [vmem:[%s3 + $0x28] sm:$0xff]
      %v165 = vld [vmem:[%s3 + $0x30] sm:$0xff]
      %v166 = vld [vmem:[%s3 + $0x38] sm:$0xff]
      %168 = vset.pattern.permute.xlu0 0
      %169 = vperm.xlu0 %168, %v159
      %v170 = vpop.permute.xlu0 %169
      %173 = vset.pattern.permute.xlu0 0
      %174 = vperm.xlu0 %173, %v160
      %v175 = vpop.permute.xlu0 %174
      %178 = vset.pattern.permute.xlu0 0
      %179 = vperm.xlu0 %178, %v161
      %v180 = vpop.permute.xlu0 %179
      %183 = vset.pattern.permute.xlu0 0
      %184 = vperm.xlu0 %183, %v162
      %v185 = vpop.permute.xlu0 %184
      %188 = vset.pattern.permute.xlu0 0
      %189 = vperm.xlu0 %188, %v163
      %v190 = vpop.permute.xlu0 %189
      %193 = vset.pattern.permute.xlu0 0
      %194 = vperm.xlu0 %193, %v164
      %v195 = vpop.permute.xlu0 %194
      %198 = vset.pattern.permute.xlu0 0
      %199 = vperm.xlu0 %198, %v165
      %v200 = vpop.permute.xlu0 %199
      %203 = vset.pattern.permute.xlu0 0
      %204 = vperm.xlu0 %203, %v166
      %v205 = vpop.permute.xlu0 %204
      %v211 = vunpack.c.l.b16 %v155
      %v212 = vunpack.c.l.b16 %v156
      %v213 = vunpack.c.l.b16 %v157
      %v214 = vunpack.c.l.b16 %v158
      %v215 = vpack.c.b16 %v212, %v211
      %v216 = vpack.c.b16 %v214, %v213
      %219 = vxpose.xlu0.c.b16.start [1/8] %v215, 128
      %220 = vxpose.xlu0.c.b16.cont [2/8] %v216, 128
      %221 = vxpose.xlu0.c.b16.cont [3/8] 0, 128
      %222 = vxpose.xlu0.c.b16.cont [4/8] 0, 128
      %223 = vxpose.xlu0.c.b16.cont [5/8] 0, 128
      %224 = vxpose.xlu0.c.b16.cont [6/8] 0, 128
      %225 = vxpose.xlu0.c.b16.cont [7/8] 0, 128
      %226 = vxpose.xlu0.c.b16.end [8/8] 0, 128
      %v227 = vpop.trf.xlu0
      %v228 = vpop.trf.xlu0
      %v229 = vpop.trf.xlu0
      %v230 = vpop.trf.xlu0
      %v231 = vpop.trf.xlu0
      %v232 = vpop.trf.xlu0
      %v233 = vpop.trf.xlu0
      %v234 = vpop.trf.xlu0
      %v239 = vunpack.c.l.b16 %v142
      %v240 = vunpack.c.h.b16 %v142
      %v241 = vunpack.c.l.b16 %v143
      %v242 = vunpack.c.h.b16 %v143
      %v243 = vunpack.c.l.b16 %v144
      %v244 = vunpack.c.h.b16 %v144
      %v245 = vunpack.c.l.b16 %v145
      %v246 = vunpack.c.h.b16 %v145
      %v247 = vpack.c.b16 %v241, %v239
      %v248 = vpack.c.b16 %v242, %v240
      %v249 = vpack.c.b16 %v245, %v243
      %v250 = vpack.c.b16 %v246, %v244
      %vm255 = vcmask 261120
      %v257 = vsel %vm255, %v227, 0
      %v260 = vsel %vm255, %v228, 0
      %v263 = vsel %vm255, %v229, 0
      %v266 = vsel %vm255, %v230, 0
      %268 = vmatprep.subr.bf16.mxu0 0
      %269 = vmatpush1.bf16.msra.mxu0 0
      %270 = vmatprep.subr.bf16.mxu0 0
      %271 = vmatpush1.bf16.msra.mxu0 0
      %272 = vmatprep.subr.bf16.mxu0 0
      %273 = vmatpush1.bf16.msra.mxu0 0
      %274 = vmatprep.subr.bf16.mxu0 0
      %275 = vmatpush1.bf16.msra.mxu0 0
      %276 = vmatprep.subr.bf16.mxu0 0
      %277 = vmatpush1.bf16.msra.mxu0 0
      %278 = vmatprep.subr.bf16.mxu0 0
      %279 = vmatpush1.bf16.msra.mxu0 0
      %280 = vmatprep.subr.bf16.mxu0 %v250
      %281 = vmatpush1.bf16.msra.mxu0 %v249
      %282 = vmatprep.subr.bf16.mxu0 %v248
      %283 = vmatpush1.bf16.msra.mxu0 %v247
      %284 = vmatprep.subr.bf16.mxu0 0
      %285 = vmatpush2.bf16.msra.mxu0 0
      %286 = vmatprep.subr.bf16.mxu0 0
      %287 = vmatpush2.bf16.msra.mxu0 0
      %288 = vmatprep.subr.bf16.mxu0 0
      %289 = vmatpush2.bf16.msra.mxu0 0
      %290 = vmatprep.subr.bf16.mxu0 0
      %291 = vmatpush2.bf16.msra.mxu0 0
      %292 = vmatprep.subr.bf16.mxu0 0
      %293 = vmatpush2.bf16.msra.mxu0 0
      %294 = vmatprep.subr.bf16.mxu0 0
      %295 = vmatpush2.bf16.msra.mxu0 0
      %296 = vmatprep.subr.bf16.mxu0 0
      %297 = vmatpush2.bf16.msra.mxu0 0
      %298 = vmatprep.subr.bf16.mxu0 0
      %299 = vmatpush2.bf16.msra.mxu0 0
      %300 = vmatprep.mubr.bf16.mxu0 0
      %301 = vmatmul.mubr.bf16.gmra.mxu0 %v257
      %v302 = vpop.f32.mrf.mxu0
      %v303 = vadd.f32 %v170, %v302
      %v304 = vpop.f32.mrf.mxu0
      %v305 = vadd.f32 %v170, %v304
      %v306 = vpop.f32.mrf.mxu0
      %v307 = vadd.f32 %v175, %v306
      %v308 = vpop.f32.mrf.mxu0
      %v309 = vadd.f32 %v175, %v308
      %310 = vmatprep.mubr.bf16.mxu0 0
      %311 = vmatmul.mubr.bf16.gmra.mxu0 %v260
      %v312 = vpop.f32.mrf.mxu0
      %v313 = vadd.f32 %v180, %v312
      %v314 = vpop.f32.mrf.mxu0
      %v315 = vadd.f32 %v180, %v314
      %v316 = vpop.f32.mrf.mxu0
      %v317 = vadd.f32 %v185, %v316
      %v318 = vpop.f32.mrf.mxu0
      %v319 = vadd.f32 %v185, %v318
      %320 = vmatprep.mubr.bf16.mxu0 0
      %321 = vmatmul.mubr.bf16.gmra.mxu0 %v263
      %v322 = vpop.f32.mrf.mxu0
      %v323 = vadd.f32 %v190, %v322
      %v324 = vpop.f32.mrf.mxu0
      %v325 = vadd.f32 %v190, %v324
      %v326 = vpop.f32.mrf.mxu0
      %v327 = vadd.f32 %v195, %v326
      %v328 = vpop.f32.mrf.mxu0
      %v329 = vadd.f32 %v195, %v328
      %330 = vmatprep.mubr.bf16.mxu0 0
      %331 = vmatmul.mubr.bf16.gmra.mxu0 %v266
      %v332 = vpop.f32.mrf.mxu0
      %v333 = vadd.f32 %v200, %v332
      %v334 = vpop.f32.mrf.mxu0
      %v335 = vadd.f32 %v200, %v334
      %v336 = vpop.f32.mrf.mxu0
      %v337 = vadd.f32 %v205, %v336
      %v338 = vpop.f32.mrf.mxu0
      %v339 = vadd.f32 %v205, %v338
      %340 = vdwg.mxu0
      %v341 = vmin.f32 %v303, %v313
      %v342 = vmin.f32 %v307, %v317
      %v343 = vmin.f32 %v341, %v323
      %v344 = vmin.f32 %v342, %v327
      %v345 = vmin.f32 %v343, %v333
      %v346 = vmin.f32 %v344, %v337
      %v347 = vmin.f32 %v345, %v346
      %v348 = vrot.slane %v347, 4
      %v349 = vmin.f32 %v347, %v348
      %v350 = vrot.slane %v349, 2
      %v351 = vmin.f32 %v349, %v350
      %v352 = vrot.slane %v351, 1
      %v353 = vmin.f32 %v351, %v352
      %v354 = vmin.f32 %v305, %v315
      %v355 = vmin.f32 %v309, %v319
      %v356 = vmin.f32 %v354, %v325
      %v357 = vmin.f32 %v355, %v329
      %v358 = vmin.f32 %v356, %v335
      %v359 = vmin.f32 %v357, %v339
      %v360 = vmin.f32 %v358, %v359
      %v361 = vrot.slane %v360, 4
      %v362 = vmin.f32 %v360, %v361
      %v363 = vrot.slane %v362, 2
      %v364 = vmin.f32 %v362, %v363
      %v365 = vrot.slane %v364, 1
      %v366 = vmin.f32 %v364, %v365
      %vm367 = vcmp.eq.f32.partialorder %v303, %v353
      %vm368 = vcmp.eq.f32.partialorder %v305, %v366
      %vm369 = vcmp.eq.f32.partialorder %v307, %v353
      %vm370 = vcmp.eq.f32.partialorder %v309, %v366
      %vm371 = vcmp.eq.f32.partialorder %v313, %v353
      %vm372 = vcmp.eq.f32.partialorder %v315, %v366
      %vm373 = vcmp.eq.f32.partialorder %v317, %v353
      %vm374 = vcmp.eq.f32.partialorder %v319, %v366
      %vm375 = vcmp.eq.f32.partialorder %v323, %v353
      %vm376 = vcmp.eq.f32.partialorder %v325, %v366
      %vm377 = vcmp.eq.f32.partialorder %v327, %v353
      %vm378 = vcmp.eq.f32.partialorder %v329, %v366
      %vm379 = vcmp.eq.f32.partialorder %v333, %v353
      %vm380 = vcmp.eq.f32.partialorder %v335, %v366
      %vm381 = vcmp.eq.f32.partialorder %v337, %v353
      %vm382 = vcmp.eq.f32.partialorder %v339, %v366
      %v383 = vsel %vm367, %v147, 64
      %v384 = vsel %vm368, %v147, 64
      %v385 = vsel %vm369, %v148, 64
      %v386 = vsel %vm370, %v148, 64
      %v387 = vsel %vm371, %v149, 64
      %v388 = vsel %vm372, %v149, 64
      %v389 = vsel %vm373, %v150, 64
      %v390 = vsel %vm374, %v150, 64
      %v391 = vsel %vm375, %v151, 64
      %v392 = vsel %vm376, %v151, 64
      %v393 = vsel %vm377, %v152, 64
      %v394 = vsel %vm378, %v152, 64
      %v395 = vsel %vm379, %v153, 64
      %v396 = vsel %vm380, %v153, 64
      %v397 = vsel %vm381, %v154, 64
      %v398 = vsel %vm382, %v154, 64
      %vm399 = vcmp.lt.s32.totalorder %v383, %v387
      %v400 = vsel %vm399, %v383, %v387
      %vm401 = vcmp.lt.s32.totalorder %v385, %v389
      %v402 = vsel %vm401, %v385, %v389
      %vm403 = vcmp.lt.s32.totalorder %v400, %v391
      %v404 = vsel %vm403, %v400, %v391
      %vm405 = vcmp.lt.s32.totalorder %v402, %v393
      %v406 = vsel %vm405, %v402, %v393
      %vm407 = vcmp.lt.s32.totalorder %v404, %v395
      %v408 = vsel %vm407, %v404, %v395
      %vm409 = vcmp.lt.s32.totalorder %v406, %v397
      %v410 = vsel %vm409, %v406, %v397
      %vm411 = vcmp.lt.s32.totalorder %v408, %v410
      %v412 = vsel %vm411, %v408, %v410
      %v413 = vrot.slane %v412, 4
      %vm414 = vcmp.lt.s32.totalorder %v412, %v413
      %v415 = vsel %vm414, %v412, %v413
      %v416 = vrot.slane %v415, 2
      %vm417 = vcmp.lt.s32.totalorder %v415, %v416
      %v418 = vsel %vm417, %v415, %v416
      %v419 = vrot.slane %v418, 1
      %vm420 = vcmp.lt.s32.totalorder %v418, %v419
      %v421 = vsel %vm420, %v418, %v419
      %vm422 = vcmp.lt.s32.totalorder %v384, %v388
      %v423 = vsel %vm422, %v384, %v388
      %vm424 = vcmp.lt.s32.totalorder %v386, %v390
      %v425 = vsel %vm424, %v386, %v390
      %vm426 = vcmp.lt.s32.totalorder %v423, %v392
      %v427 = vsel %vm426, %v423, %v392
      %vm428 = vcmp.lt.s32.totalorder %v425, %v394
      %v429 = vsel %vm428, %v425, %v394
      %vm430 = vcmp.lt.s32.totalorder %v427, %v396
      %v431 = vsel %vm430, %v427, %v396
      %vm432 = vcmp.lt.s32.totalorder %v429, %v398
      %v433 = vsel %vm432, %v429, %v398
      %vm434 = vcmp.lt.s32.totalorder %v431, %v433
      %v435 = vsel %vm434, %v431, %v433
      %v436 = vrot.slane %v435, 4
      %vm437 = vcmp.lt.s32.totalorder %v435, %v436
      %v438 = vsel %vm437, %v435, %v436
      %v439 = vrot.slane %v438, 2
      %vm440 = vcmp.lt.s32.totalorder %v438, %v439
      %v441 = vsel %vm440, %v438, %v439
      %v442 = vrot.slane %v441, 1
      %vm443 = vcmp.lt.s32.totalorder %v441, %v442
      %v444 = vsel %vm443, %v441, %v442
      %vm445 = vcmp.lt.f32.partialorder %v353, inf
      %vm446 = vcmp.lt.f32.partialorder %v366, inf
      %v447 = vsel %vm445, %v421, 0
      %v448 = vsel %vm446, %v444, 0
      %s449 = scalar_lea.vmem %s2, 16
      %v450 = vld [vmem:[%s449] sm:$0xf]
      %v451 = vld [vmem:[%s449 + $0x4] sm:$0xf]
      %v452 = vld [vmem:[%s449 + $0x8] sm:$0xf]
      %v453 = vld [vmem:[%s449 + $0xc] sm:$0xf]
      %s454 = scalar_lea.vmem %s3, 64
      %v455 = vld [vmem:[%s454] sm:$0xff]
      %v456 = vld [vmem:[%s454 + $0x8] sm:$0xff]
      %v457 = vld [vmem:[%s454 + $0x10] sm:$0xff]
      %v458 = vld [vmem:[%s454 + $0x18] sm:$0xff]
      %v459 = vld [vmem:[%s454 + $0x20] sm:$0xff]
      %v460 = vld [vmem:[%s454 + $0x28] sm:$0xff]
      %v461 = vld [vmem:[%s454 + $0x30] sm:$0xff]
      %v462 = vld [vmem:[%s454 + $0x38] sm:$0xff]
      %464 = vset.pattern.permute.xlu0 0
      %465 = vperm.xlu0 %464, %v455
      %v466 = vpop.permute.xlu0 %465
      %469 = vset.pattern.permute.xlu0 0
      %470 = vperm.xlu0 %469, %v456
      %v471 = vpop.permute.xlu0 %470
      %474 = vset.pattern.permute.xlu0 0
      %475 = vperm.xlu0 %474, %v457
      %v476 = vpop.permute.xlu0 %475
      %479 = vset.pattern.permute.xlu0 0
      %480 = vperm.xlu0 %479, %v458
      %v481 = vpop.permute.xlu0 %480
      %484 = vset.pattern.permute.xlu0 0
      %485 = vperm.xlu0 %484, %v459
      %v486 = vpop.permute.xlu0 %485
      %489 = vset.pattern.permute.xlu0 0
      %490 = vperm.xlu0 %489, %v460
      %v491 = vpop.permute.xlu0 %490
      %494 = vset.pattern.permute.xlu0 0
      %495 = vperm.xlu0 %494, %v461
      %v496 = vpop.permute.xlu0 %495
      %499 = vset.pattern.permute.xlu0 0
      %500 = vperm.xlu0 %499, %v462
      %v501 = vpop.permute.xlu0 %500
      %v507 = vunpack.c.l.b16 %v450
      %v508 = vunpack.c.l.b16 %v451
      %v509 = vunpack.c.l.b16 %v452
      %v510 = vunpack.c.l.b16 %v453
      %v511 = vpack.c.b16 %v508, %v507
      %v512 = vpack.c.b16 %v510, %v509
      %515 = vxpose.xlu0.c.b16.start [1/8] %v511, 128
      %516 = vxpose.xlu0.c.b16.cont [2/8] %v512, 128
      %517 = vxpose.xlu0.c.b16.cont [3/8] 0, 128
      %518 = vxpose.xlu0.c.b16.cont [4/8] 0, 128
      %519 = vxpose.xlu0.c.b16.cont [5/8] 0, 128
      %520 = vxpose.xlu0.c.b16.cont [6/8] 0, 128
      %521 = vxpose.xlu0.c.b16.cont [7/8] 0, 128
      %522 = vxpose.xlu0.c.b16.end [8/8] 0, 128
      %v523 = vpop.trf.xlu0
      %v524 = vpop.trf.xlu0
      %v525 = vpop.trf.xlu0
      %v526 = vpop.trf.xlu0
      %v527 = vpop.trf.xlu0
      %v528 = vpop.trf.xlu0
      %v529 = vpop.trf.xlu0
      %v530 = vpop.trf.xlu0
      %v532 = vsel %vm255, %v523, 0
      %v535 = vsel %vm255, %v524, 0
      %v538 = vsel %vm255, %v525, 0
      %v541 = vsel %vm255, %v526, 0
      %543 = vmatprep.subr.bf16.mxu0 0
      %544 = vmatpush1.bf16.msra.mxu0 0
      %545 = vmatprep.subr.bf16.mxu0 0
      %546 = vmatpush1.bf16.msra.mxu0 0
      %547 = vmatprep.subr.bf16.mxu0 0
      %548 = vmatpush1.bf16.msra.mxu0 0
      %549 = vmatprep.subr.bf16.mxu0 0
      %550 = vmatpush1.bf16.msra.mxu0 0
      %551 = vmatprep.subr.bf16.mxu0 0
      %552 = vmatpush1.bf16.msra.mxu0 0
      %553 = vmatprep.subr.bf16.mxu0 0
      %554 = vmatpush1.bf16.msra.mxu0 0
      %555 = vmatprep.subr.bf16.mxu0 %v250
      %556 = vmatpush1.bf16.msra.mxu0 %v249
      %557 = vmatprep.subr.bf16.mxu0 %v248
      %558 = vmatpush1.bf16.msra.mxu0 %v247
      %559 = vmatprep.subr.bf16.mxu0 0
      %560 = vmatpush2.bf16.msra.mxu0 0
      %561 = vmatprep.subr.bf16.mxu0 0
      %562 = vmatpush2.bf16.msra.mxu0 0
      %563 = vmatprep.subr.bf16.mxu0 0
      %564 = vmatpush2.bf16.msra.mxu0 0
      %565 = vmatprep.subr.bf16.mxu0 0
      %566 = vmatpush2.bf16.msra.mxu0 0
      %567 = vmatprep.subr.bf16.mxu0 0
      %568 = vmatpush2.bf16.msra.mxu0 0
      %569 = vmatprep.subr.bf16.mxu0 0
      %570 = vmatpush2.bf16.msra.mxu0 0
      %571 = vmatprep.subr.bf16.mxu0 0
      %572 = vmatpush2.bf16.msra.mxu0 0
      %573 = vmatprep.subr.bf16.mxu0 0
      %574 = vmatpush2.bf16.msra.mxu0 0
      %575 = vmatprep.mubr.bf16.mxu0 0
      %576 = vmatmul.mubr.bf16.gmra.mxu0 %v532
      %v577 = vpop.f32.mrf.mxu0
      %v578 = vadd.f32 %v466, %v577
      %v579 = vpop.f32.mrf.mxu0
      %v580 = vadd.f32 %v466, %v579
      %v581 = vpop.f32.mrf.mxu0
      %v582 = vadd.f32 %v471, %v581
      %v583 = vpop.f32.mrf.mxu0
      %v584 = vadd.f32 %v471, %v583
      %585 = vmatprep.mubr.bf16.mxu0 0
      %586 = vmatmul.mubr.bf16.gmra.mxu0 %v535
      %v587 = vpop.f32.mrf.mxu0
      %v588 = vadd.f32 %v476, %v587
      %v589 = vpop.f32.mrf.mxu0
      %v590 = vadd.f32 %v476, %v589
      %v591 = vpop.f32.mrf.mxu0
      %v592 = vadd.f32 %v481, %v591
      %v593 = vpop.f32.mrf.mxu0
      %v594 = vadd.f32 %v481, %v593
      %595 = vmatprep.mubr.bf16.mxu0 0
      %596 = vmatmul.mubr.bf16.gmra.mxu0 %v538
      %v597 = vpop.f32.mrf.mxu0
      %v598 = vadd.f32 %v486, %v597
      %v599 = vpop.f32.mrf.mxu0
      %v600 = vadd.f32 %v486, %v599
      %v601 = vpop.f32.mrf.mxu0
      %v602 = vadd.f32 %v491, %v601
      %v603 = vpop.f32.mrf.mxu0
      %v604 = vadd.f32 %v491, %v603
      %605 = vmatprep.mubr.bf16.mxu0 0
      %606 = vmatmul.mubr.bf16.gmra.mxu0 %v541
      %v607 = vpop.f32.mrf.mxu0
      %v608 = vadd.f32 %v496, %v607
      %v609 = vpop.f32.mrf.mxu0
      %v610 = vadd.f32 %v496, %v609
      %v611 = vpop.f32.mrf.mxu0
      %v612 = vadd.f32 %v501, %v611
      %v613 = vpop.f32.mrf.mxu0
      %v614 = vadd.f32 %v501, %v613
      %615 = vdwg.mxu0
      %v616 = vmin.f32 %v578, %v588
      %v617 = vmin.f32 %v582, %v592
      %v618 = vmin.f32 %v616, %v598
      %v619 = vmin.f32 %v617, %v602
      %v620 = vmin.f32 %v618, %v608
      %v621 = vmin.f32 %v619, %v612
      %v622 = vmin.f32 %v620, %v621
      %v623 = vrot.slane %v622, 4
      %v624 = vmin.f32 %v622, %v623
      %v625 = vrot.slane %v624, 2
      %v626 = vmin.f32 %v624, %v625
      %v627 = vrot.slane %v626, 1
      %v628 = vmin.f32 %v626, %v627
      %v629 = vmin.f32 %v580, %v590
      %v630 = vmin.f32 %v584, %v594
      %v631 = vmin.f32 %v629, %v600
      %v632 = vmin.f32 %v630, %v604
      %v633 = vmin.f32 %v631, %v610
      %v634 = vmin.f32 %v632, %v614
      %v635 = vmin.f32 %v633, %v634
      %v636 = vrot.slane %v635, 4
      %v637 = vmin.f32 %v635, %v636
      %v638 = vrot.slane %v637, 2
      %v639 = vmin.f32 %v637, %v638
      %v640 = vrot.slane %v639, 1
      %v641 = vmin.f32 %v639, %v640
      %vm642 = vcmp.eq.f32.partialorder %v578, %v628
      %vm643 = vcmp.eq.f32.partialorder %v580, %v641
      %vm644 = vcmp.eq.f32.partialorder %v582, %v628
      %vm645 = vcmp.eq.f32.partialorder %v584, %v641
      %vm646 = vcmp.eq.f32.partialorder %v588, %v628
      %vm647 = vcmp.eq.f32.partialorder %v590, %v641
      %vm648 = vcmp.eq.f32.partialorder %v592, %v628
      %vm649 = vcmp.eq.f32.partialorder %v594, %v641
      %vm650 = vcmp.eq.f32.partialorder %v598, %v628
      %vm651 = vcmp.eq.f32.partialorder %v600, %v641
      %vm652 = vcmp.eq.f32.partialorder %v602, %v628
      %vm653 = vcmp.eq.f32.partialorder %v604, %v641
      %vm654 = vcmp.eq.f32.partialorder %v608, %v628
      %vm655 = vcmp.eq.f32.partialorder %v610, %v641
      %vm656 = vcmp.eq.f32.partialorder %v612, %v628
      %vm657 = vcmp.eq.f32.partialorder %v614, %v641
      %v658 = vsel %vm642, %v147, 64
      %v659 = vsel %vm643, %v147, 64
      %v660 = vsel %vm644, %v148, 64
      %v661 = vsel %vm645, %v148, 64
      %v662 = vsel %vm646, %v149, 64
      %v663 = vsel %vm647, %v149, 64
      %v664 = vsel %vm648, %v150, 64
      %v665 = vsel %vm649, %v150, 64
      %v666 = vsel %vm650, %v151, 64
      %v667 = vsel %vm651, %v151, 64
      %v668 = vsel %vm652, %v152, 64
      %v669 = vsel %vm653, %v152, 64
      %v670 = vsel %vm654, %v153, 64
      %v671 = vsel %vm655, %v153, 64
      %v672 = vsel %vm656, %v154, 64
      %v673 = vsel %vm657, %v154, 64
      %vm674 = vcmp.lt.s32.totalorder %v658, %v662
      %v675 = vsel %vm674, %v658, %v662
      %vm676 = vcmp.lt.s32.totalorder %v660, %v664
      %v677 = vsel %vm676, %v660, %v664
      %vm678 = vcmp.lt.s32.totalorder %v675, %v666
      %v679 = vsel %vm678, %v675, %v666
      %vm680 = vcmp.lt.s32.totalorder %v677, %v668
      %v681 = vsel %vm680, %v677, %v668
      %vm682 = vcmp.lt.s32.totalorder %v679, %v670
      %v683 = vsel %vm682, %v679, %v670
      %vm684 = vcmp.lt.s32.totalorder %v681, %v672
      %v685 = vsel %vm684, %v681, %v672
      %vm686 = vcmp.lt.s32.totalorder %v683, %v685
      %v687 = vsel %vm686, %v683, %v685
      %v688 = vrot.slane %v687, 4
      %vm689 = vcmp.lt.s32.totalorder %v687, %v688
      %v690 = vsel %vm689, %v687, %v688
      %v691 = vrot.slane %v690, 2
      %vm692 = vcmp.lt.s32.totalorder %v690, %v691
      %v693 = vsel %vm692, %v690, %v691
      %v694 = vrot.slane %v693, 1
      %vm695 = vcmp.lt.s32.totalorder %v693, %v694
      %v696 = vsel %vm695, %v693, %v694
      %vm697 = vcmp.lt.s32.totalorder %v659, %v663
      %v698 = vsel %vm697, %v659, %v663
      %vm699 = vcmp.lt.s32.totalorder %v661, %v665
      %v700 = vsel %vm699, %v661, %v665
      %vm701 = vcmp.lt.s32.totalorder %v698, %v667
      %v702 = vsel %vm701, %v698, %v667
      %vm703 = vcmp.lt.s32.totalorder %v700, %v669
      %v704 = vsel %vm703, %v700, %v669
      %vm705 = vcmp.lt.s32.totalorder %v702, %v671
      %v706 = vsel %vm705, %v702, %v671
      %vm707 = vcmp.lt.s32.totalorder %v704, %v673
      %v708 = vsel %vm707, %v704, %v673
      %vm709 = vcmp.lt.s32.totalorder %v706, %v708
      %v710 = vsel %vm709, %v706, %v708
      %v711 = vrot.slane %v710, 4
      %vm712 = vcmp.lt.s32.totalorder %v710, %v711
      %v713 = vsel %vm712, %v710, %v711
      %v714 = vrot.slane %v713, 2
      %vm715 = vcmp.lt.s32.totalorder %v713, %v714
      %v716 = vsel %vm715, %v713, %v714
      %v717 = vrot.slane %v716, 1
      %vm718 = vcmp.lt.s32.totalorder %v716, %v717
      %v719 = vsel %vm718, %v716, %v717
      %vm720 = vcmp.lt.f32.partialorder %v628, %v353
      %vm721 = vcmp.lt.f32.partialorder %v641, %v366
      %v722 = vadd.s32 %v696, 64
      %v723 = vadd.s32 %v719, 64
      %v724 = vsel %vm720, %v722, %v447
      %v725 = vsel %vm721, %v723, %v448
      %v726 = vmin.f32 %v353, %v628
      %v727 = vmin.f32 %v366, %v641
      %s728 = scalar_lea.vmem %s2, 32
      %v729 = vld [vmem:[%s728] sm:$0xf]
      %v730 = vld [vmem:[%s728 + $0x4] sm:$0xf]
      %v731 = vld [vmem:[%s728 + $0x8] sm:$0xf]
      %v732 = vld [vmem:[%s728 + $0xc] sm:$0xf]
      %s733 = scalar_lea.vmem %s3, 128
      %v734 = vld [vmem:[%s733] sm:$0xff]
      %v735 = vld [vmem:[%s733 + $0x8] sm:$0xff]
      %v736 = vld [vmem:[%s733 + $0x10] sm:$0xff]
      %v737 = vld [vmem:[%s733 + $0x18] sm:$0xff]
      %v738 = vld [vmem:[%s733 + $0x20] sm:$0xff]
      %v739 = vld [vmem:[%s733 + $0x28] sm:$0xff]
      %v740 = vld [vmem:[%s733 + $0x30] sm:$0xff]
      %v741 = vld [vmem:[%s733 + $0x38] sm:$0xff]
      %743 = vset.pattern.permute.xlu0 0
      %744 = vperm.xlu0 %743, %v734
      %v745 = vpop.permute.xlu0 %744
      %748 = vset.pattern.permute.xlu0 0
      %749 = vperm.xlu0 %748, %v735
      %v750 = vpop.permute.xlu0 %749
      %753 = vset.pattern.permute.xlu0 0
      %754 = vperm.xlu0 %753, %v736
      %v755 = vpop.permute.xlu0 %754
      %758 = vset.pattern.permute.xlu0 0
      %759 = vperm.xlu0 %758, %v737
      %v760 = vpop.permute.xlu0 %759
      %763 = vset.pattern.permute.xlu0 0
      %764 = vperm.xlu0 %763, %v738
      %v765 = vpop.permute.xlu0 %764
      %768 = vset.pattern.permute.xlu0 0
      %769 = vperm.xlu0 %768, %v739
      %v770 = vpop.permute.xlu0 %769
      %773 = vset.pattern.permute.xlu0 0
      %774 = vperm.xlu0 %773, %v740
      %v775 = vpop.permute.xlu0 %774
      %778 = vset.pattern.permute.xlu0 0
      %779 = vperm.xlu0 %778, %v741
      %v780 = vpop.permute.xlu0 %779
      %v786 = vunpack.c.l.b16 %v729
      %v787 = vunpack.c.l.b16 %v730
      %v788 = vunpack.c.l.b16 %v731
      %v789 = vunpack.c.l.b16 %v732
      %v790 = vpack.c.b16 %v787, %v786
      %v791 = vpack.c.b16 %v789, %v788
      %794 = vxpose.xlu0.c.b16.start [1/8] %v790, 128
      %795 = vxpose.xlu0.c.b16.cont [2/8] %v791, 128
      %796 = vxpose.xlu0.c.b16.cont [3/8] 0, 128
      %797 = vxpose.xlu0.c.b16.cont [4/8] 0, 128
      %798 = vxpose.xlu0.c.b16.cont [5/8] 0, 128
      %799 = vxpose.xlu0.c.b16.cont [6/8] 0, 128
      %800 = vxpose.xlu0.c.b16.cont [7/8] 0, 128
      %801 = vxpose.xlu0.c.b16.end [8/8] 0, 128
      %v802 = vpop.trf.xlu0
      %v803 = vpop.trf.xlu0
      %v804 = vpop.trf.xlu0
      %v805 = vpop.trf.xlu0
      %v806 = vpop.trf.xlu0
      %v807 = vpop.trf.xlu0
      %v808 = vpop.trf.xlu0
      %v809 = vpop.trf.xlu0
      %v811 = vsel %vm255, %v802, 0
      %v814 = vsel %vm255, %v803, 0
      %v817 = vsel %vm255, %v804, 0
      %v820 = vsel %vm255, %v805, 0
      %822 = vmatprep.subr.bf16.mxu0 0
      %823 = vmatpush1.bf16.msra.mxu0 0
      %824 = vmatprep.subr.bf16.mxu0 0
      %825 = vmatpush1.bf16.msra.mxu0 0
      %826 = vmatprep.subr.bf16.mxu0 0
      %827 = vmatpush1.bf16.msra.mxu0 0
      %828 = vmatprep.subr.bf16.mxu0 0
      %829 = vmatpush1.bf16.msra.mxu0 0
      %830 = vmatprep.subr.bf16.mxu0 0
      %831 = vmatpush1.bf16.msra.mxu0 0
      %832 = vmatprep.subr.bf16.mxu0 0
      %833 = vmatpush1.bf16.msra.mxu0 0
      %834 = vmatprep.subr.bf16.mxu0 %v250
      %835 = vmatpush1.bf16.msra.mxu0 %v249
      %836 = vmatprep.subr.bf16.mxu0 %v248
      %837 = vmatpush1.bf16.msra.mxu0 %v247
      %838 = vmatprep.subr.bf16.mxu0 0
      %839 = vmatpush2.bf16.msra.mxu0 0
      %840 = vmatprep.subr.bf16.mxu0 0
      %841 = vmatpush2.bf16.msra.mxu0 0
      %842 = vmatprep.subr.bf16.mxu0 0
      %843 = vmatpush2.bf16.msra.mxu0 0
      %844 = vmatprep.subr.bf16.mxu0 0
      %845 = vmatpush2.bf16.msra.mxu0 0
      %846 = vmatprep.subr.bf16.mxu0 0
      %847 = vmatpush2.bf16.msra.mxu0 0
      %848 = vmatprep.subr.bf16.mxu0 0
      %849 = vmatpush2.bf16.msra.mxu0 0
      %850 = vmatprep.subr.bf16.mxu0 0
      %851 = vmatpush2.bf16.msra.mxu0 0
      %852 = vmatprep.subr.bf16.mxu0 0
      %853 = vmatpush2.bf16.msra.mxu0 0
      %854 = vmatprep.mubr.bf16.mxu0 0
      %855 = vmatmul.mubr.bf16.gmra.mxu0 %v811
      %v856 = vpop.f32.mrf.mxu0
      %v857 = vadd.f32 %v745, %v856
      %v858 = vpop.f32.mrf.mxu0
      %v859 = vadd.f32 %v745, %v858
      %v860 = vpop.f32.mrf.mxu0
      %v861 = vadd.f32 %v750, %v860
      %v862 = vpop.f32.mrf.mxu0
      %v863 = vadd.f32 %v750, %v862
      %864 = vmatprep.mubr.bf16.mxu0 0
      %865 = vmatmul.mubr.bf16.gmra.mxu0 %v814
      %v866 = vpop.f32.mrf.mxu0
      %v867 = vadd.f32 %v755, %v866
      %v868 = vpop.f32.mrf.mxu0
      %v869 = vadd.f32 %v755, %v868
      %v870 = vpop.f32.mrf.mxu0
      %v871 = vadd.f32 %v760, %v870
      %v872 = vpop.f32.mrf.mxu0
      %v873 = vadd.f32 %v760, %v872
      %874 = vmatprep.mubr.bf16.mxu0 0
      %875 = vmatmul.mubr.bf16.gmra.mxu0 %v817
      %v876 = vpop.f32.mrf.mxu0
      %v877 = vadd.f32 %v765, %v876
      %v878 = vpop.f32.mrf.mxu0
      %v879 = vadd.f32 %v765, %v878
      %v880 = vpop.f32.mrf.mxu0
      %v881 = vadd.f32 %v770, %v880
      %v882 = vpop.f32.mrf.mxu0
      %v883 = vadd.f32 %v770, %v882
      %884 = vmatprep.mubr.bf16.mxu0 0
      %885 = vmatmul.mubr.bf16.gmra.mxu0 %v820
      %v886 = vpop.f32.mrf.mxu0
      %v887 = vadd.f32 %v775, %v886
      %v888 = vpop.f32.mrf.mxu0
      %v889 = vadd.f32 %v775, %v888
      %v890 = vpop.f32.mrf.mxu0
      %v891 = vadd.f32 %v780, %v890
      %v892 = vpop.f32.mrf.mxu0
      %v893 = vadd.f32 %v780, %v892
      %894 = vdwg.mxu0
      %v895 = vmin.f32 %v857, %v867
      %v896 = vmin.f32 %v861, %v871
      %v897 = vmin.f32 %v895, %v877
      %v898 = vmin.f32 %v896, %v881
      %v899 = vmin.f32 %v897, %v887
      %v900 = vmin.f32 %v898, %v891
      %v901 = vmin.f32 %v899, %v900
      %v902 = vrot.slane %v901, 4
      %v903 = vmin.f32 %v901, %v902
      %v904 = vrot.slane %v903, 2
      %v905 = vmin.f32 %v903, %v904
      %v906 = vrot.slane %v905, 1
      %v907 = vmin.f32 %v905, %v906
      %v908 = vmin.f32 %v859, %v869
      %v909 = vmin.f32 %v863, %v873
      %v910 = vmin.f32 %v908, %v879
      %v911 = vmin.f32 %v909, %v883
      %v912 = vmin.f32 %v910, %v889
      %v913 = vmin.f32 %v911, %v893
      %v914 = vmin.f32 %v912, %v913
      %v915 = vrot.slane %v914, 4
      %v916 = vmin.f32 %v914, %v915
      %v917 = vrot.slane %v916, 2
      %v918 = vmin.f32 %v916, %v917
      %v919 = vrot.slane %v918, 1
      %v920 = vmin.f32 %v918, %v919
      %vm921 = vcmp.eq.f32.partialorder %v857, %v907
      %vm922 = vcmp.eq.f32.partialorder %v859, %v920
      %vm923 = vcmp.eq.f32.partialorder %v861, %v907
      %vm924 = vcmp.eq.f32.partialorder %v863, %v920
      %vm925 = vcmp.eq.f32.partialorder %v867, %v907
      %vm926 = vcmp.eq.f32.partialorder %v869, %v920
      %vm927 = vcmp.eq.f32.partialorder %v871, %v907
      %vm928 = vcmp.eq.f32.partialorder %v873, %v920
      %vm929 = vcmp.eq.f32.partialorder %v877, %v907
      %vm930 = vcmp.eq.f32.partialorder %v879, %v920
      %vm931 = vcmp.eq.f32.partialorder %v881, %v907
      %vm932 = vcmp.eq.f32.partialorder %v883, %v920
      %vm933 = vcmp.eq.f32.partialorder %v887, %v907
      %vm934 = vcmp.eq.f32.partialorder %v889, %v920
      %vm935 = vcmp.eq.f32.partialorder %v891, %v907
      %vm936 = vcmp.eq.f32.partialorder %v893, %v920
      %v937 = vsel %vm921, %v147, 64
      %v938 = vsel %vm922, %v147, 64
      %v939 = vsel %vm923, %v148, 64
      %v940 = vsel %vm924, %v148, 64
      %v941 = vsel %vm925, %v149, 64
      %v942 = vsel %vm926, %v149, 64
      %v943 = vsel %vm927, %v150, 64
      %v944 = vsel %vm928, %v150, 64
      %v945 = vsel %vm929, %v151, 64
      %v946 = vsel %vm930, %v151, 64
      %v947 = vsel %vm931, %v152, 64
      %v948 = vsel %vm932, %v152, 64
      %v949 = vsel %vm933, %v153, 64
      %v950 = vsel %vm934, %v153, 64
      %v951 = vsel %vm935, %v154, 64
      %v952 = vsel %vm936, %v154, 64
      %vm953 = vcmp.lt.s32.totalorder %v937, %v941
      %v954 = vsel %vm953, %v937, %v941
      %vm955 = vcmp.lt.s32.totalorder %v939, %v943
      %v956 = vsel %vm955, %v939, %v943
      %vm957 = vcmp.lt.s32.totalorder %v954, %v945
      %v958 = vsel %vm957, %v954, %v945
      %vm959 = vcmp.lt.s32.totalorder %v956, %v947
      %v960 = vsel %vm959, %v956, %v947
      %vm961 = vcmp.lt.s32.totalorder %v958, %v949
      %v962 = vsel %vm961, %v958, %v949
      %vm963 = vcmp.lt.s32.totalorder %v960, %v951
      %v964 = vsel %vm963, %v960, %v951
      %vm965 = vcmp.lt.s32.totalorder %v962, %v964
      %v966 = vsel %vm965, %v962, %v964
      %v967 = vrot.slane %v966, 4
      %vm968 = vcmp.lt.s32.totalorder %v966, %v967
      %v969 = vsel %vm968, %v966, %v967
      %v970 = vrot.slane %v969, 2
      %vm971 = vcmp.lt.s32.totalorder %v969, %v970
      %v972 = vsel %vm971, %v969, %v970
      %v973 = vrot.slane %v972, 1
      %vm974 = vcmp.lt.s32.totalorder %v972, %v973
      %v975 = vsel %vm974, %v972, %v973
      %vm976 = vcmp.lt.s32.totalorder %v938, %v942
      %v977 = vsel %vm976, %v938, %v942
      %vm978 = vcmp.lt.s32.totalorder %v940, %v944
      %v979 = vsel %vm978, %v940, %v944
      %vm980 = vcmp.lt.s32.totalorder %v977, %v946
      %v981 = vsel %vm980, %v977, %v946
      %vm982 = vcmp.lt.s32.totalorder %v979, %v948
      %v983 = vsel %vm982, %v979, %v948
      %vm984 = vcmp.lt.s32.totalorder %v981, %v950
      %v985 = vsel %vm984, %v981, %v950
      %vm986 = vcmp.lt.s32.totalorder %v983, %v952
      %v987 = vsel %vm986, %v983, %v952
      %vm988 = vcmp.lt.s32.totalorder %v985, %v987
      %v989 = vsel %vm988, %v985, %v987
      %v990 = vrot.slane %v989, 4
      %vm991 = vcmp.lt.s32.totalorder %v989, %v990
      %v992 = vsel %vm991, %v989, %v990
      %v993 = vrot.slane %v992, 2
      %vm994 = vcmp.lt.s32.totalorder %v992, %v993
      %v995 = vsel %vm994, %v992, %v993
      %v996 = vrot.slane %v995, 1
      %vm997 = vcmp.lt.s32.totalorder %v995, %v996
      %v998 = vsel %vm997, %v995, %v996
      %vm999 = vcmp.lt.f32.partialorder %v907, %v726
      %vm1000 = vcmp.lt.f32.partialorder %v920, %v727
      %v1001 = vadd.s32 %v975, 128
      %v1002 = vadd.s32 %v998, 128
      %v1003 = vsel %vm999, %v1001, %v724
      %v1004 = vsel %vm1000, %v1002, %v725
      %v1005 = vmin.f32 %v726, %v907
      %v1006 = vmin.f32 %v727, %v920
      %s1007 = scalar_lea.vmem %s2, 48
      %v1008 = vld [vmem:[%s1007] sm:$0xf]
      %v1009 = vld [vmem:[%s1007 + $0x4] sm:$0xf]
      %v1010 = vld [vmem:[%s1007 + $0x8] sm:$0xf]
      %v1011 = vld [vmem:[%s1007 + $0xc] sm:$0xf]
      %s1012 = scalar_lea.vmem %s3, 192
      %v1013 = vld [vmem:[%s1012] sm:$0xff]
      %v1014 = vld [vmem:[%s1012 + $0x8] sm:$0xff]
      %v1015 = vld [vmem:[%s1012 + $0x10] sm:$0xff]
      %v1016 = vld [vmem:[%s1012 + $0x18] sm:$0xff]
      %v1017 = vld [vmem:[%s1012 + $0x20] sm:$0xff]
      %v1018 = vld [vmem:[%s1012 + $0x28] sm:$0xff]
      %v1019 = vld [vmem:[%s1012 + $0x30] sm:$0xff]
      %v1020 = vld [vmem:[%s1012 + $0x38] sm:$0xff]
      %1022 = vset.pattern.permute.xlu0 0
      %1023 = vperm.xlu0 %1022, %v1013
      %v1024 = vpop.permute.xlu0 %1023
      %1027 = vset.pattern.permute.xlu0 0
      %1028 = vperm.xlu0 %1027, %v1014
      %v1029 = vpop.permute.xlu0 %1028
      %1032 = vset.pattern.permute.xlu0 0
      %1033 = vperm.xlu0 %1032, %v1015
      %v1034 = vpop.permute.xlu0 %1033
      %1037 = vset.pattern.permute.xlu0 0
      %1038 = vperm.xlu0 %1037, %v1016
      %v1039 = vpop.permute.xlu0 %1038
      %1042 = vset.pattern.permute.xlu0 0
      %1043 = vperm.xlu0 %1042, %v1017
      %v1044 = vpop.permute.xlu0 %1043
      %1047 = vset.pattern.permute.xlu0 0
      %1048 = vperm.xlu0 %1047, %v1018
      %v1049 = vpop.permute.xlu0 %1048
      %1052 = vset.pattern.permute.xlu0 0
      %1053 = vperm.xlu0 %1052, %v1019
      %v1054 = vpop.permute.xlu0 %1053
      %1057 = vset.pattern.permute.xlu0 0
      %1058 = vperm.xlu0 %1057, %v1020
      %v1059 = vpop.permute.xlu0 %1058
      %v1065 = vunpack.c.l.b16 %v1008
      %v1066 = vunpack.c.l.b16 %v1009
      %v1067 = vunpack.c.l.b16 %v1010
      %v1068 = vunpack.c.l.b16 %v1011
      %v1069 = vpack.c.b16 %v1066, %v1065
      %v1070 = vpack.c.b16 %v1068, %v1067
      %1073 = vxpose.xlu0.c.b16.start [1/8] %v1069, 128
      %1074 = vxpose.xlu0.c.b16.cont [2/8] %v1070, 128
      %1075 = vxpose.xlu0.c.b16.cont [3/8] 0, 128
      %1076 = vxpose.xlu0.c.b16.cont [4/8] 0, 128
      %1077 = vxpose.xlu0.c.b16.cont [5/8] 0, 128
      %1078 = vxpose.xlu0.c.b16.cont [6/8] 0, 128
      %1079 = vxpose.xlu0.c.b16.cont [7/8] 0, 128
      %1080 = vxpose.xlu0.c.b16.end [8/8] 0, 128
      %v1081 = vpop.trf.xlu0
      %v1082 = vpop.trf.xlu0
      %v1083 = vpop.trf.xlu0
      %v1084 = vpop.trf.xlu0
      %v1085 = vpop.trf.xlu0
      %v1086 = vpop.trf.xlu0
      %v1087 = vpop.trf.xlu0
      %v1088 = vpop.trf.xlu0
      %v1090 = vsel %vm255, %v1081, 0
      %v1093 = vsel %vm255, %v1082, 0
      %v1096 = vsel %vm255, %v1083, 0
      %v1099 = vsel %vm255, %v1084, 0
      %1101 = vmatprep.subr.bf16.mxu0 0
      %1102 = vmatpush1.bf16.msra.mxu0 0
      %1103 = vmatprep.subr.bf16.mxu0 0
      %1104 = vmatpush1.bf16.msra.mxu0 0
      %1105 = vmatprep.subr.bf16.mxu0 0
      %1106 = vmatpush1.bf16.msra.mxu0 0
      %1107 = vmatprep.subr.bf16.mxu0 0
      %1108 = vmatpush1.bf16.msra.mxu0 0
      %1109 = vmatprep.subr.bf16.mxu0 0
      %1110 = vmatpush1.bf16.msra.mxu0 0
      %1111 = vmatprep.subr.bf16.mxu0 0
      %1112 = vmatpush1.bf16.msra.mxu0 0
      %1113 = vmatprep.subr.bf16.mxu0 %v250
      %1114 = vmatpush1.bf16.msra.mxu0 %v249
      %1115 = vmatprep.subr.bf16.mxu0 %v248
      %1116 = vmatpush1.bf16.msra.mxu0 %v247
      %1117 = vmatprep.subr.bf16.mxu0 0
      %1118 = vmatpush2.bf16.msra.mxu0 0
      %1119 = vmatprep.subr.bf16.mxu0 0
      %1120 = vmatpush2.bf16.msra.mxu0 0
      %1121 = vmatprep.subr.bf16.mxu0 0
      %1122 = vmatpush2.bf16.msra.mxu0 0
      %1123 = vmatprep.subr.bf16.mxu0 0
      %1124 = vmatpush2.bf16.msra.mxu0 0
      %1125 = vmatprep.subr.bf16.mxu0 0
      %1126 = vmatpush2.bf16.msra.mxu0 0
      %1127 = vmatprep.subr.bf16.mxu0 0
      %1128 = vmatpush2.bf16.msra.mxu0 0
      %1129 = vmatprep.subr.bf16.mxu0 0
      %1130 = vmatpush2.bf16.msra.mxu0 0
      %1131 = vmatprep.subr.bf16.mxu0 0
      %1132 = vmatpush2.bf16.msra.mxu0 0
      %1133 = vmatprep.mubr.bf16.mxu0 0
      %1134 = vmatmul.mubr.bf16.gmra.mxu0 %v1090
      %v1135 = vpop.f32.mrf.mxu0
      %v1136 = vadd.f32 %v1024, %v1135
      %v1137 = vpop.f32.mrf.mxu0
      %v1138 = vadd.f32 %v1024, %v1137
      %v1139 = vpop.f32.mrf.mxu0
      %v1140 = vadd.f32 %v1029, %v1139
      %v1141 = vpop.f32.mrf.mxu0
      %v1142 = vadd.f32 %v1029, %v1141
      %1143 = vmatprep.mubr.bf16.mxu0 0
      %1144 = vmatmul.mubr.bf16.gmra.mxu0 %v1093
      %v1145 = vpop.f32.mrf.mxu0
      %v1146 = vadd.f32 %v1034, %v1145
      %v1147 = vpop.f32.mrf.mxu0
      %v1148 = vadd.f32 %v1034, %v1147
      %v1149 = vpop.f32.mrf.mxu0
      %v1150 = vadd.f32 %v1039, %v1149
      %v1151 = vpop.f32.mrf.mxu0
      %v1152 = vadd.f32 %v1039, %v1151
      %1153 = vmatprep.mubr.bf16.mxu0 0
      %1154 = vmatmul.mubr.bf16.gmra.mxu0 %v1096
      %v1155 = vpop.f32.mrf.mxu0
      %v1156 = vadd.f32 %v1044, %v1155
      %v1157 = vpop.f32.mrf.mxu0
      %v1158 = vadd.f32 %v1044, %v1157
      %v1159 = vpop.f32.mrf.mxu0
      %v1160 = vadd.f32 %v1049, %v1159
      %v1161 = vpop.f32.mrf.mxu0
      %v1162 = vadd.f32 %v1049, %v1161
      %1163 = vmatprep.mubr.bf16.mxu0 0
      %1164 = vmatmul.mubr.bf16.gmra.mxu0 %v1099
      %v1165 = vpop.f32.mrf.mxu0
      %v1166 = vadd.f32 %v1054, %v1165
      %v1167 = vpop.f32.mrf.mxu0
      %v1168 = vadd.f32 %v1054, %v1167
      %v1169 = vpop.f32.mrf.mxu0
      %v1170 = vadd.f32 %v1059, %v1169
      %v1171 = vpop.f32.mrf.mxu0
      %v1172 = vadd.f32 %v1059, %v1171
      %1173 = vdwg.mxu0
      %v1174 = vmin.f32 %v1136, %v1146
      %v1175 = vmin.f32 %v1140, %v1150
      %v1176 = vmin.f32 %v1174, %v1156
      %v1177 = vmin.f32 %v1175, %v1160
      %v1178 = vmin.f32 %v1176, %v1166
      %v1179 = vmin.f32 %v1177, %v1170
      %v1180 = vmin.f32 %v1178, %v1179
      %v1181 = vrot.slane %v1180, 4
      %v1182 = vmin.f32 %v1180, %v1181
      %v1183 = vrot.slane %v1182, 2
      %v1184 = vmin.f32 %v1182, %v1183
      %v1185 = vrot.slane %v1184, 1
      %v1186 = vmin.f32 %v1184, %v1185
      %v1187 = vmin.f32 %v1138, %v1148
      %v1188 = vmin.f32 %v1142, %v1152
      %v1189 = vmin.f32 %v1187, %v1158
      %v1190 = vmin.f32 %v1188, %v1162
      %v1191 = vmin.f32 %v1189, %v1168
      %v1192 = vmin.f32 %v1190, %v1172
      %v1193 = vmin.f32 %v1191, %v1192
      %v1194 = vrot.slane %v1193, 4
      %v1195 = vmin.f32 %v1193, %v1194
      %v1196 = vrot.slane %v1195, 2
      %v1197 = vmin.f32 %v1195, %v1196
      %v1198 = vrot.slane %v1197, 1
      %v1199 = vmin.f32 %v1197, %v1198
      %vm1200 = vcmp.eq.f32.partialorder %v1136, %v1186
      %vm1201 = vcmp.eq.f32.partialorder %v1138, %v1199
      %vm1202 = vcmp.eq.f32.partialorder %v1140, %v1186
      %vm1203 = vcmp.eq.f32.partialorder %v1142, %v1199
      %vm1204 = vcmp.eq.f32.partialorder %v1146, %v1186
      %vm1205 = vcmp.eq.f32.partialorder %v1148, %v1199
      %vm1206 = vcmp.eq.f32.partialorder %v1150, %v1186
      %vm1207 = vcmp.eq.f32.partialorder %v1152, %v1199
      %vm1208 = vcmp.eq.f32.partialorder %v1156, %v1186
      %vm1209 = vcmp.eq.f32.partialorder %v1158, %v1199
      %vm1210 = vcmp.eq.f32.partialorder %v1160, %v1186
      %vm1211 = vcmp.eq.f32.partialorder %v1162, %v1199
      %vm1212 = vcmp.eq.f32.partialorder %v1166, %v1186
      %vm1213 = vcmp.eq.f32.partialorder %v1168, %v1199
      %vm1214 = vcmp.eq.f32.partialorder %v1170, %v1186
      %vm1215 = vcmp.eq.f32.partialorder %v1172, %v1199
      %v1216 = vsel %vm1200, %v147, 64
      %v1217 = vsel %vm1201, %v147, 64
      %v1218 = vsel %vm1202, %v148, 64
      %v1219 = vsel %vm1203, %v148, 64
      %v1220 = vsel %vm1204, %v149, 64
      %v1221 = vsel %vm1205, %v149, 64
      %v1222 = vsel %vm1206, %v150, 64
      %v1223 = vsel %vm1207, %v150, 64
      %v1224 = vsel %vm1208, %v151, 64
      %v1225 = vsel %vm1209, %v151, 64
      %v1226 = vsel %vm1210, %v152, 64
      %v1227 = vsel %vm1211, %v152, 64
      %v1228 = vsel %vm1212, %v153, 64
      %v1229 = vsel %vm1213, %v153, 64
      %v1230 = vsel %vm1214, %v154, 64
      %v1231 = vsel %vm1215, %v154, 64
      %vm1232 = vcmp.lt.s32.totalorder %v1216, %v1220
      %v1233 = vsel %vm1232, %v1216, %v1220
      %vm1234 = vcmp.lt.s32.totalorder %v1218, %v1222
      %v1235 = vsel %vm1234, %v1218, %v1222
      %vm1236 = vcmp.lt.s32.totalorder %v1233, %v1224
      %v1237 = vsel %vm1236, %v1233, %v1224
      %vm1238 = vcmp.lt.s32.totalorder %v1235, %v1226
      %v1239 = vsel %vm1238, %v1235, %v1226
      %vm1240 = vcmp.lt.s32.totalorder %v1237, %v1228
      %v1241 = vsel %vm1240, %v1237, %v1228
      %vm1242 = vcmp.lt.s32.totalorder %v1239, %v1230
      %v1243 = vsel %vm1242, %v1239, %v1230
      %vm1244 = vcmp.lt.s32.totalorder %v1241, %v1243
      %v1245 = vsel %vm1244, %v1241, %v1243
      %v1246 = vrot.slane %v1245, 4
      %vm1247 = vcmp.lt.s32.totalorder %v1245, %v1246
      %v1248 = vsel %vm1247, %v1245, %v1246
      %v1249 = vrot.slane %v1248, 2
      %vm1250 = vcmp.lt.s32.totalorder %v1248, %v1249
      %v1251 = vsel %vm1250, %v1248, %v1249
      %v1252 = vrot.slane %v1251, 1
      %vm1253 = vcmp.lt.s32.totalorder %v1251, %v1252
      %v1254 = vsel %vm1253, %v1251, %v1252
      %vm1255 = vcmp.lt.s32.totalorder %v1217, %v1221
      %v1256 = vsel %vm1255, %v1217, %v1221
      %vm1257 = vcmp.lt.s32.totalorder %v1219, %v1223
      %v1258 = vsel %vm1257, %v1219, %v1223
      %vm1259 = vcmp.lt.s32.totalorder %v1256, %v1225
      %v1260 = vsel %vm1259, %v1256, %v1225
      %vm1261 = vcmp.lt.s32.totalorder %v1258, %v1227
      %v1262 = vsel %vm1261, %v1258, %v1227
      %vm1263 = vcmp.lt.s32.totalorder %v1260, %v1229
      %v1264 = vsel %vm1263, %v1260, %v1229
      %vm1265 = vcmp.lt.s32.totalorder %v1262, %v1231
      %v1266 = vsel %vm1265, %v1262, %v1231
      %vm1267 = vcmp.lt.s32.totalorder %v1264, %v1266
      %v1268 = vsel %vm1267, %v1264, %v1266
      %v1269 = vrot.slane %v1268, 4
      %vm1270 = vcmp.lt.s32.totalorder %v1268, %v1269
      %v1271 = vsel %vm1270, %v1268, %v1269
      %v1272 = vrot.slane %v1271, 2
      %vm1273 = vcmp.lt.s32.totalorder %v1271, %v1272
      %v1274 = vsel %vm1273, %v1271, %v1272
      %v1275 = vrot.slane %v1274, 1
      %vm1276 = vcmp.lt.s32.totalorder %v1274, %v1275
      %v1277 = vsel %vm1276, %v1274, %v1275
      %vm1278 = vcmp.lt.f32.partialorder %v1186, %v1005
      %vm1279 = vcmp.lt.f32.partialorder %v1199, %v1006
      %v1280 = vadd.s32 %v1254, 192
      %v1281 = vadd.s32 %v1277, 192
      %v1282 = vsel %vm1278, %v1280, %v1003
      %v1283 = vsel %vm1279, %v1281, %v1004
      %v1284 = vcombine.low %v1282, %v1283
      %v1286 = vunpack.c.l.s4 1966171168
      %v1287 = vunpack.c.0.s8 %v1286
      %v1288 = vlaneseq
      %v1289 = vshrl.u32 %v1288, 7
      %v1290 = vsub.s32 %v1287, %v1289
      %v1291 = vrot.slane %v1284, %v1290
      %v1293 = vunpack.c.l.s4 1966171168
      %v1294 = vunpack.c.0.s8 %v1293
      %v1295 = vlaneseq
      %v1296 = vshrl.u32 %v1295, 7
      %v1297 = vsub.s32 %v1294, %v1296
      %v1298 = vrot.slane %v1291, %v1297
      %s1299 = scalar_lea.vmem [#allocation4], %s128
      %v1300 = vlaneseq
      %vm1301 = vcmp.ge.s32.totalorder %v1300, 0
      %vm1302 = vcmp.lt.s32.totalorder %v1300, 256
      %vm1303 = vmand %vm1301, %vm1302
      %1304 = vst.msk [vmem:[%s1299] sm:$0x3] %vm1303, %v1298
    $region74: #{tpu_custom_call.1} parent=1 // loop_footer
      %s126 = sadd.s32 1, %s122
    $region75: #{tpu_custom_call.1} parent=1 // loop_footer_branch
      %121 = sbr.rel target = $region71
    $region76: #{tpu_custom_call.1} parent=1 // loop_exit
      _
    // Predicated region
    $region77: #{tpu_custom_call.1} parent=1 // pred_check
      _
    $region78: #{tpu_custom_call.1} parent=1 // pred_check_branch
      %1306 = sbr.rel (0) target = $region80
    $region79: #{tpu_custom_call.1} parent=1 // pred_region
      %s1308 = ssub.s32 96, 96
      %1309 = vsyncadd [#allocation5], %s1308
      %s1311 = sshll.u32 [#allocation4], 4
      %s1312 = int_to_ptr.vmem [resolvable:$true] %s1311
      %1314 = dma.vmem_to_hbm [thread:$0]  %s1312, 96, %s4, [#allocation5]
    $region80: #{tpu_custom_call.1} parent=1 // pred_fallthru
      _
    // Predicated region
    $region81: #{tpu_custom_call.1} parent=1 // pred_check
      _
    $region82: #{tpu_custom_call.1} parent=1 // pred_check_branch
      %1316 = sbr.rel (0) target = $region84
    $region83: #{tpu_custom_call.1} parent=1 // pred_region
      %1317 = dma.done [#allocation5], 96
    $region84: #{tpu_custom_call.1} parent=1 // pred_fallthru
      _
    %1318 = vsyncpa [#allocation5], 1

</llo_original>
